<compile_context>
chip_gen: v7x
topology: tpu7x:2x2x1
jax: 0.10.0
libtpu: 0.0.40
codegen_flags: <defaults>
</compile_context>

<pallas_src>
import functools

import jax
import jax.numpy as jnp
from jax import lax
from jax.experimental import pallas as pl
from jax.experimental.pallas import tpu as pltpu

NUM_AUG_STAGES = 14     # 14 AutoAugment modules in self.model_list
NUM_CLASSES = 10        # cifar10 policy -> 10-way classification
NPAD = 128              # lane-dense padded logit width (student 0..9, teacher 10..19)
ALPHA = 3.0
BETA = 1.0
_CHUNK = 8              # rows per in-register sub-chunk for the aug chain
_MAX_TILE_ROWS = 512    # batch-tile size (fits default scoped VMEM on v5e/v6e/v7x)


def _round_up(n, m):
    return ((n + m - 1) // m) * m


# ---------------------------------------------------------------------------
# Fused kernel: 14-stage augmentation chain + classifier matmul + CE sums
# ---------------------------------------------------------------------------
def _fused_kernel(scale_ref, off_ref, x_ref, w_ref, b_ref, yoh_ref,
                  xaug_ref, loss_ref, *, batch, tile_rows):
    # TODO(synk): kornia AutoAugment('cifar10') samples random sub-policies and
    # applies geometric warps (ShearX/Translate/Rotate); only the deterministic
    # differentiable photometric (contrast/brightness) path is implemented.
    i = pl.program_id(0)

    # --- 14-stage chain, folded to one FMA + clamp per stage, fully unrolled.
    # Process 8-row chunks so each vreg chunk stays live across all 14 stages:
    # exactly one VMEM load and one VMEM store per element.
    scales = [scale_ref[k] for k in range(NUM_AUG_STAGES)]
    offs = [off_ref[k] for k in range(NUM_AUG_STAGES)]

    @pl.loop(0, tile_rows // _CHUNK)
    def _(r):
        row = pl.multiple_of(r * _CHUNK, _CHUNK)
        xv = x_ref[pl.ds(row, _CHUNK), :]
        for k in range(NUM_AUG_STAGES):
            xv = jnp.clip(xv * scales[k] + offs[k], 0.0, 1.0)   # model(x).clamp(0,1)
        xaug_ref[pl.ds(row, _CHUNK), :] = xv

    # --- fused student|teacher classifier: one padded lane-dense MXU matmul.
    xa = xaug_ref[...]                                            # VMEM re-read (cheap)
    logits = jnp.dot(xa, w_ref[...],
                     preferred_element_type=jnp.float32) + b_ref[...]   # (TB, 128)

    lane = lax.broadcasted_iota(jnp.int32, logits.shape, 1)
    yoh = yoh_ref[...]                                            # one-hot at y and y+NC

    def masked_ce(lo, hi):
        # F.cross_entropy with mean reduction (the mean is taken in the wrapper).
        mask = (lane >= lo) & (lane < hi)
        z = jnp.where(mask, logits, -1e30)
        m = jnp.max(z, axis=-1, keepdims=True)
        lse = jnp.log(jnp.sum(jnp.exp(z - m), axis=-1, keepdims=True)) + m
        correct = jnp.sum(jnp.where(mask, logits, 0.0) * yoh, axis=-1, keepdims=True)
        return lse - correct                                      # (TB, 1)

    ce_s = masked_ce(0, NUM_CLASSES)                  # student CE per row
    ce_t = masked_ce(NUM_CLASSES, 2 * NUM_CLASSES)    # teacher CE per row

    # Mask padded rows of the last (partial) batch tile out of the sums.
    row_idx = i * tile_rows + lax.broadcasted_iota(jnp.int32, (tile_rows, 1), 0)
    valid = (row_idx < batch).astype(jnp.float32)
    ce_s = ce_s * valid
    ce_t = ce_t * valid

    # Lane-dense partial sums: lane 0 = teacher CE sum, lane 1 = student CE sum.
    contrib = jnp.where(lane == 0, ce_t, 0.0) + jnp.where(lane == 1, ce_s, 0.0)
    partial = jnp.sum(contrib, axis=0, keepdims=True)             # (1, NPAD)

    @pl.when(i == 0)
    def _():
        loss_ref[...] = jnp.zeros_like(loss_ref)

    loss_ref[...] += partial


# ---------------------------------------------------------------------------
# Wrapper
# ---------------------------------------------------------------------------
def init_params(key, feature_dim):
    k1, k2, k3, k4 = jax.random.split(key, 4)
    return {
        # one (brightness, contrast) magnitude pair per augmentation stage
        "brightness": jax.random.uniform(k1, (NUM_AUG_STAGES,), jnp.float32, -0.1, 0.1),
        "contrast":   jax.random.uniform(k2, (NUM_AUG_STAGES,), jnp.float32, 0.9, 1.1),
        # synthetic student / teacher linear classifiers (flatten -> logits)
        "ws": 0.02 * jax.random.normal(k3, (feature_dim, NUM_CLASSES), jnp.float32),
        "bs": jnp.zeros((1, NUM_CLASSES), jnp.float32),
        "wt": 0.02 * jax.random.normal(k4, (feature_dim, NUM_CLASSES), jnp.float32),
        "bt": jnp.zeros((1, NUM_CLASSES), jnp.float32),
    }


def differentiable_autoaug_forward(params, x, y):
    """Returns (augmented_x, y, loss_dict) like DifferentiableAutoAug.forward."""
    B, C, H, W = x.shape
    D = C * H * W
    x_flat = x.reshape(B, D).astype(jnp.float32)

    # Fold each stage c*(x-0.5)+0.5+b into a single FMA: x*c + off.
    scale = params["contrast"].astype(jnp.float32)
    off = (0.5 * (1.0 - scale) + params["brightness"]).astype(jnp.float32)

    # Student|teacher weights concatenated and zero-padded to a lane-dense [D, 128].
    w_cat = jnp.zeros((D, NPAD), jnp.float32)
    w_cat = w_cat.at[:, :NUM_CLASSES].set(params["ws"])
    w_cat = w_cat.at[:, NUM_CLASSES:2 * NUM_CLASSES].set(params["wt"])
    b_cat = jnp.zeros((1, NPAD), jnp.float32)
    b_cat = b_cat.at[:, :NUM_CLASSES].set(params["bs"][0])
    b_cat = b_cat.at[:, NUM_CLASSES:2 * NUM_CLASSES].set(params["bt"][0])

    # Batch tiling: pad rows to a multiple of the tile.
    tile_rows = min(_MAX_TILE_ROWS, _round_up(B, _CHUNK))
    b_pad = _round_up(B, tile_rows)
    x_p = jnp.pad(x_flat, ((0, b_pad - B), (0, 0)))
    y_p = jnp.pad(y, ((0, b_pad - B),))
    # One-hot at lane y (student region) and lane NC+y (teacher region).
    y2 = (jax.nn.one_hot(y_p, NPAD, dtype=jnp.float32)
          + jax.nn.one_hot(y_p + NUM_CLASSES, NPAD, dtype=jnp.float32))

    grid = (b_pad // tile_rows,)
    kernel = functools.partial(_fused_kernel, batch=B, tile_rows=tile_rows)

    x_aug_p, loss_row = pl.pallas_call(
        kernel,
        out_shape=(jax.ShapeDtypeStruct((b_pad, D), jnp.float32),
                   jax.ShapeDtypeStruct((1, NPAD), jnp.float32)),
        grid=grid,
        in_specs=[
            pl.BlockSpec(memory_space=pltpu.SMEM),                 # scale (14,)
            pl.BlockSpec(memory_space=pltpu.SMEM),                 # off   (14,)
            pl.BlockSpec((tile_rows, D), lambda i: (i, 0)),        # x tile
            pl.BlockSpec((D, NPAD), lambda i: (0, 0)),             # weights (resident)
            pl.BlockSpec((1, NPAD), lambda i: (0, 0)),             # biases  (resident)
            pl.BlockSpec((tile_rows, NPAD), lambda i: (i, 0)),     # one-hot labels tile
        ],
        out_specs=(
            pl.BlockSpec((tile_rows, D), lambda i: (i, 0)),        # x_aug tile
            pl.BlockSpec((1, NPAD), lambda i: (0, 0)),             # CE-sum accumulator
        ),
        input_output_aliases={2: 0},                               # x_p is dead after call
        compiler_params=pltpu.CompilerParams(
            dimension_semantics=("arbitrary",)),                   # loss accumulates over tiles
    )(scale, off, x_p, w_cat, b_cat, y2)

    t_loss = loss_row[0, 0] / B        # mean CE(teacher_out, y)
    s_loss = loss_row[0, 1] / B        # mean CE(student_out, y)
    teacher_loss = ALPHA * t_loss
    student_loss = BETA * s_loss
    loss_dict = {
        "teacher_loss": teacher_loss,
        "student_loss": student_loss,
        "total_loss":   teacher_loss - student_loss,
    }
    # TODO(synk): loss.backward() + Adam step + clamp() on the augmentation
    # magnitudes are training-time side effects, not forward compute; skipped.
    x_aug = x_aug_p[:B].reshape(B, C, H, W)
    return x_aug, y, loss_dict


if __name__ == "__main__":
    key = jax.random.PRNGKey(0)
    kx, ky, kp = jax.random.split(key, 3)

    B, C, H, W = 2, 4, 16, 16
    x = jax.random.uniform(kx, (B, C, H, W), jnp.float32)        # images in [0, 1]
    y = jax.random.randint(ky, (B,), 0, NUM_CLASSES, jnp.int32)  # labels

    params = init_params(kp, C * H * W)

    x_out, y_out, loss_dict = jax.jit(differentiable_autoaug_forward)(params, x, y)
    jax.block_until_ready((x_out, y_out, loss_dict))

    assert x_out.shape == (B, C, H, W)
    assert float(jnp.min(x_out)) >= 0.0 and float(jnp.max(x_out)) <= 1.0
    assert all(k in loss_dict for k in ("teacher_loss", "student_loss", "total_loss"))
    assert all(bool(jnp.isfinite(v)) for v in loss_dict.values())

    print("KERNEL_OK")
</pallas_src>

<mosaic_0001>
module attributes {stable_mosaic.version = 11 : i64} {
  func.func @_fused_kernel(%arg0: i32, %arg1: memref<14xf32, #tpu.memory_space<smem>>, %arg2: memref<14xf32, #tpu.memory_space<smem>>, %arg3: memref<8x1024xf32, #tpu.memory_space<vmem>>, %arg4: memref<1024x128xf32, #tpu.memory_space<vmem>>, %arg5: memref<1x128xf32, #tpu.memory_space<vmem>>, %arg6: memref<8x128xf32, #tpu.memory_space<vmem>>, %arg7: memref<8x1024xf32, #tpu.memory_space<vmem>>, %arg8: memref<1x128xf32, #tpu.memory_space<vmem>>) attributes {dimension_semantics = [#tpu.dimension_semantics<arbitrary>], iteration_bounds = array<i64: 1>, scalar_prefetch = 0 : i64, scratch_operands = 0 : i64, tpu.core_type = #tpu.core_type<tc>, window_params = [{transform_indices = @transform_0, window_bounds = array<i64: 14>}, {transform_indices = @transform_1, window_bounds = array<i64: 14>}, {transform_indices = @transform_2, window_bounds = array<i64: 8, 1024>}, {pipeline_mode = #tpu.pipeline_mode<synchronous>, transform_indices = @transform_3, window_bounds = array<i64: 1024, 128>}, {pipeline_mode = #tpu.pipeline_mode<synchronous>, transform_indices = @transform_4, window_bounds = array<i64: 1, 128>}, {transform_indices = @transform_5, window_bounds = array<i64: 8, 128>}, {transform_indices = @transform_6, window_bounds = array<i64: 8, 1024>}, {pipeline_mode = #tpu.pipeline_mode<synchronous>, transform_indices = @transform_7, window_bounds = array<i64: 1, 128>}]} {
    %c0 = arith.constant 0 : index
    %0 = memref.load %arg1[%c0] : memref<14xf32, #tpu.memory_space<smem>>
    %c1 = arith.constant 1 : index
    %1 = memref.load %arg1[%c1] : memref<14xf32, #tpu.memory_space<smem>>
    %c2 = arith.constant 2 : index
    %2 = memref.load %arg1[%c2] : memref<14xf32, #tpu.memory_space<smem>>
    %c3 = arith.constant 3 : index
    %3 = memref.load %arg1[%c3] : memref<14xf32, #tpu.memory_space<smem>>
    %c4 = arith.constant 4 : index
    %4 = memref.load %arg1[%c4] : memref<14xf32, #tpu.memory_space<smem>>
    %c5 = arith.constant 5 : index
    %5 = memref.load %arg1[%c5] : memref<14xf32, #tpu.memory_space<smem>>
    %c6 = arith.constant 6 : index
    %6 = memref.load %arg1[%c6] : memref<14xf32, #tpu.memory_space<smem>>
    %c7 = arith.constant 7 : index
    %7 = memref.load %arg1[%c7] : memref<14xf32, #tpu.memory_space<smem>>
    %c8 = arith.constant 8 : index
    %8 = memref.load %arg1[%c8] : memref<14xf32, #tpu.memory_space<smem>>
    %c9 = arith.constant 9 : index
    %9 = memref.load %arg1[%c9] : memref<14xf32, #tpu.memory_space<smem>>
    %c10 = arith.constant 10 : index
    %10 = memref.load %arg1[%c10] : memref<14xf32, #tpu.memory_space<smem>>
    %c11 = arith.constant 11 : index
    %11 = memref.load %arg1[%c11] : memref<14xf32, #tpu.memory_space<smem>>
    %c12 = arith.constant 12 : index
    %12 = memref.load %arg1[%c12] : memref<14xf32, #tpu.memory_space<smem>>
    %c13 = arith.constant 13 : index
    %13 = memref.load %arg1[%c13] : memref<14xf32, #tpu.memory_space<smem>>
    %c0_0 = arith.constant 0 : index
    %14 = memref.load %arg2[%c0_0] : memref<14xf32, #tpu.memory_space<smem>>
    %c1_1 = arith.constant 1 : index
    %15 = memref.load %arg2[%c1_1] : memref<14xf32, #tpu.memory_space<smem>>
    %c2_2 = arith.constant 2 : index
    %16 = memref.load %arg2[%c2_2] : memref<14xf32, #tpu.memory_space<smem>>
    %c3_3 = arith.constant 3 : index
    %17 = memref.load %arg2[%c3_3] : memref<14xf32, #tpu.memory_space<smem>>
    %c4_4 = arith.constant 4 : index
    %18 = memref.load %arg2[%c4_4] : memref<14xf32, #tpu.memory_space<smem>>
    %c5_5 = arith.constant 5 : index
    %19 = memref.load %arg2[%c5_5] : memref<14xf32, #tpu.memory_space<smem>>
    %c6_6 = arith.constant 6 : index
    %20 = memref.load %arg2[%c6_6] : memref<14xf32, #tpu.memory_space<smem>>
    %c7_7 = arith.constant 7 : index
    %21 = memref.load %arg2[%c7_7] : memref<14xf32, #tpu.memory_space<smem>>
    %c8_8 = arith.constant 8 : index
    %22 = memref.load %arg2[%c8_8] : memref<14xf32, #tpu.memory_space<smem>>
    %c9_9 = arith.constant 9 : index
    %23 = memref.load %arg2[%c9_9] : memref<14xf32, #tpu.memory_space<smem>>
    %c10_10 = arith.constant 10 : index
    %24 = memref.load %arg2[%c10_10] : memref<14xf32, #tpu.memory_space<smem>>
    %c11_11 = arith.constant 11 : index
    %25 = memref.load %arg2[%c11_11] : memref<14xf32, #tpu.memory_space<smem>>
    %c12_12 = arith.constant 12 : index
    %26 = memref.load %arg2[%c12_12] : memref<14xf32, #tpu.memory_space<smem>>
    %c13_13 = arith.constant 13 : index
    %27 = memref.load %arg2[%c13_13] : memref<14xf32, #tpu.memory_space<smem>>
    %c0_i32 = arith.constant 0 : i32
    %c1_i32 = arith.constant 1 : i32
    %28 = arith.muli %c0_i32, %c1_i32 : i32
    %c0_i32_14 = arith.constant 0 : i32
    %29 = arith.addi %c0_i32_14, %28 : i32
    %c8_i32 = arith.constant 8 : i32
    %30 = arith.muli %29, %c8_i32 : i32
    %31 = tpu.assume_multiple %30, 8 : i32
    %32 = arith.index_cast %31 : i32 to index
    %c0_15 = arith.constant 0 : index
    %33 = vector.load %arg3[%32, %c0_15] : memref<8x1024xf32, #tpu.memory_space<vmem>>, vector<8x1024xf32>
    %34 = vector.broadcast %0 : f32 to vector<8x1024xf32>
    %35 = arith.mulf %33, %34 : vector<8x1024xf32>
    %36 = vector.broadcast %14 : f32 to vector<8x1024xf32>
    %37 = arith.addf %35, %36 : vector<8x1024xf32>
    %cst = arith.constant 0.000000e+00 : f32
    %cst_16 = arith.constant 1.000000e+00 : f32
    %38 = vector.broadcast %cst : f32 to vector<8x1024xf32>
    %39 = arith.maximumf %38, %37 : vector<8x1024xf32>
    %40 = vector.broadcast %cst_16 : f32 to vector<8x1024xf32>
    %41 = arith.minimumf %40, %39 : vector<8x1024xf32>
    %42 = vector.broadcast %1 : f32 to vector<8x1024xf32>
    %43 = arith.mulf %41, %42 : vector<8x1024xf32>
    %44 = vector.broadcast %15 : f32 to vector<8x1024xf32>
    %45 = arith.addf %43, %44 : vector<8x1024xf32>
    %cst_17 = arith.constant 0.000000e+00 : f32
    %cst_18 = arith.constant 1.000000e+00 : f32
    %46 = vector.broadcast %cst_17 : f32 to vector<8x1024xf32>
    %47 = arith.maximumf %46, %45 : vector<8x1024xf32>
    %48 = vector.broadcast %cst_18 : f32 to vector<8x1024xf32>
    %49 = arith.minimumf %48, %47 : vector<8x1024xf32>
    %50 = vector.broadcast %2 : f32 to vector<8x1024xf32>
    %51 = arith.mulf %49, %50 : vector<8x1024xf32>
    %52 = vector.broadcast %16 : f32 to vector<8x1024xf32>
    %53 = arith.addf %51, %52 : vector<8x1024xf32>
    %cst_19 = arith.constant 0.000000e+00 : f32
    %cst_20 = arith.constant 1.000000e+00 : f32
    %54 = vector.broadcast %cst_19 : f32 to vector<8x1024xf32>
    %55 = arith.maximumf %54, %53 : vector<8x1024xf32>
    %56 = vector.broadcast %cst_20 : f32 to vector<8x1024xf32>
    %57 = arith.minimumf %56, %55 : vector<8x1024xf32>
    %58 = vector.broadcast %3 : f32 to vector<8x1024xf32>
    %59 = arith.mulf %57, %58 : vector<8x1024xf32>
    %60 = vector.broadcast %17 : f32 to vector<8x1024xf32>
    %61 = arith.addf %59, %60 : vector<8x1024xf32>
    %cst_21 = arith.constant 0.000000e+00 : f32
    %cst_22 = arith.constant 1.000000e+00 : f32
    %62 = vector.broadcast %cst_21 : f32 to vector<8x1024xf32>
    %63 = arith.maximumf %62, %61 : vector<8x1024xf32>
    %64 = vector.broadcast %cst_22 : f32 to vector<8x1024xf32>
    %65 = arith.minimumf %64, %63 : vector<8x1024xf32>
    %66 = vector.broadcast %4 : f32 to vector<8x1024xf32>
    %67 = arith.mulf %65, %66 : vector<8x1024xf32>
    %68 = vector.broadcast %18 : f32 to vector<8x1024xf32>
    %69 = arith.addf %67, %68 : vector<8x1024xf32>
    %cst_23 = arith.constant 0.000000e+00 : f32
    %cst_24 = arith.constant 1.000000e+00 : f32
    %70 = vector.broadcast %cst_23 : f32 to vector<8x1024xf32>
    %71 = arith.maximumf %70, %69 : vector<8x1024xf32>
    %72 = vector.broadcast %cst_24 : f32 to vector<8x1024xf32>
    %73 = arith.minimumf %72, %71 : vector<8x1024xf32>
    %74 = vector.broadcast %5 : f32 to vector<8x1024xf32>
    %75 = arith.mulf %73, %74 : vector<8x1024xf32>
    %76 = vector.broadcast %19 : f32 to vector<8x1024xf32>
    %77 = arith.addf %75, %76 : vector<8x1024xf32>
    %cst_25 = arith.constant 0.000000e+00 : f32
    %cst_26 = arith.constant 1.000000e+00 : f32
    %78 = vector.broadcast %cst_25 : f32 to vector<8x1024xf32>
    %79 = arith.maximumf %78, %77 : vector<8x1024xf32>
    %80 = vector.broadcast %cst_26 : f32 to vector<8x1024xf32>
    %81 = arith.minimumf %80, %79 : vector<8x1024xf32>
    %82 = vector.broadcast %6 : f32 to vector<8x1024xf32>
    %83 = arith.mulf %81, %82 : vector<8x1024xf32>
    %84 = vector.broadcast %20 : f32 to vector<8x1024xf32>
    %85 = arith.addf %83, %84 : vector<8x1024xf32>
    %cst_27 = arith.constant 0.000000e+00 : f32
    %cst_28 = arith.constant 1.000000e+00 : f32
    %86 = vector.broadcast %cst_27 : f32 to vector<8x1024xf32>
    %87 = arith.maximumf %86, %85 : vector<8x1024xf32>
    %88 = vector.broadcast %cst_28 : f32 to vector<8x1024xf32>
    %89 = arith.minimumf %88, %87 : vector<8x1024xf32>
    %90 = vector.broadcast %7 : f32 to vector<8x1024xf32>
    %91 = arith.mulf %89, %90 : vector<8x1024xf32>
    %92 = vector.broadcast %21 : f32 to vector<8x1024xf32>
    %93 = arith.addf %91, %92 : vector<8x1024xf32>
    %cst_29 = arith.constant 0.000000e+00 : f32
    %cst_30 = arith.constant 1.000000e+00 : f32
    %94 = vector.broadcast %cst_29 : f32 to vector<8x1024xf32>
    %95 = arith.maximumf %94, %93 : vector<8x1024xf32>
    %96 = vector.broadcast %cst_30 : f32 to vector<8x1024xf32>
    %97 = arith.minimumf %96, %95 : vector<8x1024xf32>
    %98 = vector.broadcast %8 : f32 to vector<8x1024xf32>
    %99 = arith.mulf %97, %98 : vector<8x1024xf32>
    %100 = vector.broadcast %22 : f32 to vector<8x1024xf32>
    %101 = arith.addf %99, %100 : vector<8x1024xf32>
    %cst_31 = arith.constant 0.000000e+00 : f32
    %cst_32 = arith.constant 1.000000e+00 : f32
    %102 = vector.broadcast %cst_31 : f32 to vector<8x1024xf32>
    %103 = arith.maximumf %102, %101 : vector<8x1024xf32>
    %104 = vector.broadcast %cst_32 : f32 to vector<8x1024xf32>
    %105 = arith.minimumf %104, %103 : vector<8x1024xf32>
    %106 = vector.broadcast %9 : f32 to vector<8x1024xf32>
    %107 = arith.mulf %105, %106 : vector<8x1024xf32>
    %108 = vector.broadcast %23 : f32 to vector<8x1024xf32>
    %109 = arith.addf %107, %108 : vector<8x1024xf32>
    %cst_33 = arith.constant 0.000000e+00 : f32
    %cst_34 = arith.constant 1.000000e+00 : f32
    %110 = vector.broadcast %cst_33 : f32 to vector<8x1024xf32>
    %111 = arith.maximumf %110, %109 : vector<8x1024xf32>
    %112 = vector.broadcast %cst_34 : f32 to vector<8x1024xf32>
    %113 = arith.minimumf %112, %111 : vector<8x1024xf32>
    %114 = vector.broadcast %10 : f32 to vector<8x1024xf32>
    %115 = arith.mulf %113, %114 : vector<8x1024xf32>
    %116 = vector.broadcast %24 : f32 to vector<8x1024xf32>
    %117 = arith.addf %115, %116 : vector<8x1024xf32>
    %cst_35 = arith.constant 0.000000e+00 : f32
    %cst_36 = arith.constant 1.000000e+00 : f32
    %118 = vector.broadcast %cst_35 : f32 to vector<8x1024xf32>
    %119 = arith.maximumf %118, %117 : vector<8x1024xf32>
    %120 = vector.broadcast %cst_36 : f32 to vector<8x1024xf32>
    %121 = arith.minimumf %120, %119 : vector<8x1024xf32>
    %122 = vector.broadcast %11 : f32 to vector<8x1024xf32>
    %123 = arith.mulf %121, %122 : vector<8x1024xf32>
    %124 = vector.broadcast %25 : f32 to vector<8x1024xf32>
    %125 = arith.addf %123, %124 : vector<8x1024xf32>
    %cst_37 = arith.constant 0.000000e+00 : f32
    %cst_38 = arith.constant 1.000000e+00 : f32
    %126 = vector.broadcast %cst_37 : f32 to vector<8x1024xf32>
    %127 = arith.maximumf %126, %125 : vector<8x1024xf32>
    %128 = vector.broadcast %cst_38 : f32 to vector<8x1024xf32>
    %129 = arith.minimumf %128, %127 : vector<8x1024xf32>
    %130 = vector.broadcast %12 : f32 to vector<8x1024xf32>
    %131 = arith.mulf %129, %130 : vector<8x1024xf32>
    %132 = vector.broadcast %26 : f32 to vector<8x1024xf32>
    %133 = arith.addf %131, %132 : vector<8x1024xf32>
    %cst_39 = arith.constant 0.000000e+00 : f32
    %cst_40 = arith.constant 1.000000e+00 : f32
    %134 = vector.broadcast %cst_39 : f32 to vector<8x1024xf32>
    %135 = arith.maximumf %134, %133 : vector<8x1024xf32>
    %136 = vector.broadcast %cst_40 : f32 to vector<8x1024xf32>
    %137 = arith.minimumf %136, %135 : vector<8x1024xf32>
    %138 = vector.broadcast %13 : f32 to vector<8x1024xf32>
    %139 = arith.mulf %137, %138 : vector<8x1024xf32>
    %140 = vector.broadcast %27 : f32 to vector<8x1024xf32>
    %141 = arith.addf %139, %140 : vector<8x1024xf32>
    %cst_41 = arith.constant 0.000000e+00 : f32
    %cst_42 = arith.constant 1.000000e+00 : f32
    %142 = vector.broadcast %cst_41 : f32 to vector<8x1024xf32>
    %143 = arith.maximumf %142, %141 : vector<8x1024xf32>
    %144 = vector.broadcast %cst_42 : f32 to vector<8x1024xf32>
    %145 = arith.minimumf %144, %143 : vector<8x1024xf32>
    %146 = arith.index_cast %31 : i32 to index
    %c0_43 = arith.constant 0 : index
    %147 = vector.load %arg7[%146, %c0_43] : memref<8x1024xf32, #tpu.memory_space<vmem>>, vector<8x1024xf32>
    tpu.vector_store %arg7[%146, %c0_43], %145 {strides = array<i32>} : memref<8x1024xf32, #tpu.memory_space<vmem>>, vector<8x1024xf32>,
    %c1_i32_44 = arith.constant 1 : i32
    %c0_45 = arith.constant 0 : index
    %c0_46 = arith.constant 0 : index
    %148 = vector.load %arg7[%c0_45, %c0_46] : memref<8x1024xf32, #tpu.memory_space<vmem>>, vector<8x1024xf32>
    %c0_47 = arith.constant 0 : index
    %c0_48 = arith.constant 0 : index
    %149 = vector.load %arg4[%c0_47, %c0_48] : memref<1024x128xf32, #tpu.memory_space<vmem>>, vector<1024x128xf32>
    %cst_49 = arith.constant dense<0.000000e+00> : vector<8x128xf32>
    %150 = tpu.matmul %148, %149, %cst_49 {dimension_numbers = #tpu.dot_dimension_numbers<[1], [0], [0], [1], [0, 0, 1, 1], [], []>} : vector<8x1024xf32>, vector<1024x128xf32>, vector<8x128xf32> -> vector<8x128xf32>
    %c0_50 = arith.constant 0 : index
    %c0_51 = arith.constant 0 : index
    %151 = vector.load %arg5[%c0_50, %c0_51] : memref<1x128xf32, #tpu.memory_space<vmem>>, vector<1x128xf32>
    %152 = vector.broadcast %151 : vector<1x128xf32> to vector<8x128xf32>
    %153 = arith.addf %150, %152 : vector<8x128xf32>
    %154 = tpu.iota {dimensions = array<i32: 1>} : vector<8x128xi32>
    %c0_52 = arith.constant 0 : index
    %c0_53 = arith.constant 0 : index
    %155 = vector.load %arg6[%c0_52, %c0_53] : memref<8x128xf32, #tpu.memory_space<vmem>>, vector<8x128xf32>
    %c0_i32_54 = arith.constant 0 : i32
    %156 = vector.broadcast %c0_i32_54 : i32 to vector<8x128xi32>
    %157 = arith.cmpi sge, %154, %156 : vector<8x128xi32>
    %c10_i32 = arith.constant 10 : i32
    %158 = vector.broadcast %c10_i32 : i32 to vector<8x128xi32>
    %159 = arith.cmpi slt, %154, %158 : vector<8x128xi32>
    %160 = arith.andi %157, %159 : vector<8x128xi1>
    %cst_55 = arith.constant -1.000000e+30 : f32
    %161 = vector.broadcast %cst_55 : f32 to vector<8x128xf32>
    %162 = arith.select %160, %153, %161 : vector<8x128xi1>, vector<8x128xf32>
    %cst_56 = arith.constant dense<0xFF800000> : vector<8xf32>
    %163 = vector.multi_reduction <maximumf>, %162, %cst_56 [1] : vector<8x128xf32> to vector<8xf32>
    %164 = vector.shape_cast %163 : vector<8xf32> to vector<8x1xf32>
    %165 = vector.broadcast %164 : vector<8x1xf32> to vector<8x128xf32>
    %166 = arith.subf %162, %165 : vector<8x128xf32>
    %167 = math.exp %166 : vector<8x128xf32>
    %cst_57 = arith.constant dense<0.000000e+00> : vector<8xf32>
    %168 = vector.multi_reduction <add>, %167, %cst_57 [1] : vector<8x128xf32> to vector<8xf32>
    %169 = vector.shape_cast %168 : vector<8xf32> to vector<8x1xf32>
    %170 = math.log %169 : vector<8x1xf32>
    %171 = arith.addf %170, %164 : vector<8x1xf32>
    %cst_58 = arith.constant 0.000000e+00 : f32
    %172 = vector.broadcast %cst_58 : f32 to vector<8x128xf32>
    %173 = arith.select %160, %153, %172 : vector<8x128xi1>, vector<8x128xf32>
    %174 = arith.mulf %173, %155 : vector<8x128xf32>
    %cst_59 = arith.constant dense<0.000000e+00> : vector<8xf32>
    %175 = vector.multi_reduction <add>, %174, %cst_59 [1] : vector<8x128xf32> to vector<8xf32>
    %176 = vector.shape_cast %175 : vector<8xf32> to vector<8x1xf32>
    %177 = arith.subf %171, %176 : vector<8x1xf32>
    %c10_i32_60 = arith.constant 10 : i32
    %178 = vector.broadcast %c10_i32_60 : i32 to vector<8x128xi32>
    %179 = arith.cmpi sge, %154, %178 : vector<8x128xi32>
    %c20_i32 = arith.constant 20 : i32
    %180 = vector.broadcast %c20_i32 : i32 to vector<8x128xi32>
    %181 = arith.cmpi slt, %154, %180 : vector<8x128xi32>
    %182 = arith.andi %179, %181 : vector<8x128xi1>
    %cst_61 = arith.constant -1.000000e+30 : f32
    %183 = vector.broadcast %cst_61 : f32 to vector<8x128xf32>
    %184 = arith.select %182, %153, %183 : vector<8x128xi1>, vector<8x128xf32>
    %cst_62 = arith.constant dense<0xFF800000> : vector<8xf32>
    %185 = vector.multi_reduction <maximumf>, %184, %cst_62 [1] : vector<8x128xf32> to vector<8xf32>
    %186 = vector.shape_cast %185 : vector<8xf32> to vector<8x1xf32>
    %187 = vector.broadcast %186 : vector<8x1xf32> to vector<8x128xf32>
    %188 = arith.subf %184, %187 : vector<8x128xf32>
    %189 = math.exp %188 : vector<8x128xf32>
    %cst_63 = arith.constant dense<0.000000e+00> : vector<8xf32>
    %190 = vector.multi_reduction <add>, %189, %cst_63 [1] : vector<8x128xf32> to vector<8xf32>
    %191 = vector.shape_cast %190 : vector<8xf32> to vector<8x1xf32>
    %192 = math.log %191 : vector<8x1xf32>
    %193 = arith.addf %192, %186 : vector<8x1xf32>
    %cst_64 = arith.constant 0.000000e+00 : f32
    %194 = vector.broadcast %cst_64 : f32 to vector<8x128xf32>
    %195 = arith.select %182, %153, %194 : vector<8x128xi1>, vector<8x128xf32>
    %196 = arith.mulf %195, %155 : vector<8x128xf32>
    %cst_65 = arith.constant dense<0.000000e+00> : vector<8xf32>
    %197 = vector.multi_reduction <add>, %196, %cst_65 [1] : vector<8x128xf32> to vector<8xf32>
    %198 = vector.shape_cast %197 : vector<8xf32> to vector<8x1xf32>
    %199 = arith.subf %193, %198 : vector<8x1xf32>
    %c8_i32_66 = arith.constant 8 : i32
    %200 = arith.muli %arg0, %c8_i32_66 : i32
    %201 = tpu.iota {dimensions = array<i32: 0>} : vector<8x1xi32>
    %202 = vector.broadcast %200 : i32 to vector<8x1xi32>
    %203 = arith.addi %202, %201 : vector<8x1xi32>
    %c2_i32 = arith.constant 2 : i32
    %204 = vector.broadcast %c2_i32 : i32 to vector<8x1xi32>
    %205 = arith.cmpi slt, %203, %204 : vector<8x1xi32>
    %206 = arith.extui %205 : vector<8x1xi1> to vector<8x1xi32>
    %207 = arith.sitofp %206 : vector<8x1xi32> to vector<8x1xf32>
    %208 = arith.mulf %177, %207 : vector<8x1xf32>
    %209 = arith.mulf %199, %207 : vector<8x1xf32>
    %c0_i32_67 = arith.constant 0 : i32
    %210 = vector.broadcast %c0_i32_67 : i32 to vector<8x128xi32>
    %211 = arith.cmpi eq, %154, %210 : vector<8x128xi32>
    %cst_68 = arith.constant 0.000000e+00 : f32
    %212 = vector.shape_cast %209 : vector<8x1xf32> to vector<8x1xf32>
    %213 = vector.broadcast %212 : vector<8x1xf32> to vector<8x128xf32>
    %214 = vector.broadcast %cst_68 : f32 to vector<8x128xf32>
    %215 = arith.select %211, %213, %214 : vector<8x128xi1>, vector<8x128xf32>
    %c1_i32_69 = arith.constant 1 : i32
    %216 = vector.broadcast %c1_i32_69 : i32 to vector<8x128xi32>
    %217 = arith.cmpi eq, %154, %216 : vector<8x128xi32>
    %cst_70 = arith.constant 0.000000e+00 : f32
    %218 = vector.shape_cast %208 : vector<8x1xf32> to vector<8x1xf32>
    %219 = vector.broadcast %218 : vector<8x1xf32> to vector<8x128xf32>
    %220 = vector.broadcast %cst_70 : f32 to vector<8x128xf32>
    %221 = arith.select %217, %219, %220 : vector<8x128xi1>, vector<8x128xf32>
    %222 = arith.addf %215, %221 : vector<8x128xf32>
    %cst_71 = arith.constant dense<0.000000e+00> : vector<128xf32>
    %223 = vector.multi_reduction <add>, %222, %cst_71 [0] : vector<8x128xf32> to vector<128xf32>
    %224 = vector.shape_cast %223 : vector<128xf32> to vector<1x128xf32>
    %c0_i32_72 = arith.constant 0 : i32
    %225 = arith.cmpi eq, %arg0, %c0_i32_72 : i32
    %226 = arith.extui %225 : i1 to i32
    %c0_i32_73 = arith.constant 0 : i32
    %227 = arith.cmpi ne, %226, %c0_i32_73 : i32
    scf.if %227 {
      %cst_78 = arith.constant 0.000000e+00 : f32
      %231 = vector.broadcast %cst_78 : f32 to vector<1x128xf32>
      %c0_79 = arith.constant 0 : index
      %c0_80 = arith.constant 0 : index
      %232 = vector.load %arg8[%c0_79, %c0_80] : memref<1x128xf32, #tpu.memory_space<vmem>>, vector<1x128xf32>
      tpu.vector_store %arg8[%c0_79, %c0_80], %231 {strides = array<i32>} : memref<1x128xf32, #tpu.memory_space<vmem>>, vector<1x128xf32>,
    } else {
    }
    %c0_74 = arith.constant 0 : index
    %c0_75 = arith.constant 0 : index
    %228 = vector.load %arg8[%c0_74, %c0_75] : memref<1x128xf32, #tpu.memory_space<vmem>>, vector<1x128xf32>
    %229 = arith.addf %228, %224 : vector<1x128xf32>
    %c0_76 = arith.constant 0 : index
    %c0_77 = arith.constant 0 : index
    %230 = vector.load %arg8[%c0_76, %c0_77] : memref<1x128xf32, #tpu.memory_space<vmem>>, vector<1x128xf32>
    tpu.vector_store %arg8[%c0_76, %c0_77], %229 {strides = array<i32>} : memref<1x128xf32, #tpu.memory_space<vmem>>, vector<1x128xf32>,
    return
  }
  func.func @transform_0(%arg0: i32) -> i32 {
    %c0_i32 = arith.constant 0 : i32
    %c0_i32_0 = arith.constant 0 : i32
    return %c0_i32 : i32
  }
  func.func @transform_1(%arg0: i32) -> i32 {
    %c0_i32 = arith.constant 0 : i32
    %c0_i32_0 = arith.constant 0 : i32
    return %c0_i32 : i32
  }
  func.func @transform_2(%arg0: i32) -> (i32, i32) {
    %c0_i32 = arith.constant 0 : i32
    %c0_i32_0 = arith.constant 0 : i32
    return %arg0, %c0_i32 : i32, i32
  }
  func.func @transform_3(%arg0: i32) -> (i32, i32) {
    %c0_i32 = arith.constant 0 : i32
    %c0_i32_0 = arith.constant 0 : i32
    %c0_i32_1 = arith.constant 0 : i32
    return %c0_i32, %c0_i32_0 : i32, i32
  }
  func.func @transform_4(%arg0: i32) -> (i32, i32) {
    %c0_i32 = arith.constant 0 : i32
    %c0_i32_0 = arith.constant 0 : i32
    %c0_i32_1 = arith.constant 0 : i32
    return %c0_i32, %c0_i32_0 : i32, i32
  }
  func.func @transform_5(%arg0: i32) -> (i32, i32) {
    %c0_i32 = arith.constant 0 : i32
    %c0_i32_0 = arith.constant 0 : i32
    return %arg0, %c0_i32 : i32, i32
  }
  func.func @transform_6(%arg0: i32) -> (i32, i32) {
    %c0_i32 = arith.constant 0 : i32
    %c0_i32_0 = arith.constant 0 : i32
    return %arg0, %c0_i32 : i32, i32
  }
  func.func @transform_7(%arg0: i32) -> (i32, i32) {
    %c0_i32 = arith.constant 0 : i32
    %c0_i32_0 = arith.constant 0 : i32
    %c0_i32_1 = arith.constant 0 : i32
    return %c0_i32, %c0_i32_0 : i32, i32
  }
}

</mosaic_0001>

<llo_original>
// kernel: differentiable_autoaug_forward.1
$region0: #{differentiable_autoaug_forward.1}
  #allocation0 [shape = 'u32[]', space=smem, size = 0x4, offset = 0x4, fixed_abs, tag = 'smem constant byte address 0x4 - core index']
  #allocation1 [shape = 'u32[144,128]{1,0:T(1,128)}', space=vmem, size = 0x12000, scoped, tag = 'internal scratch']
  %s0 = inlined_call_operand.vmem [shape: f32[14], index: 0, kind: input, shape index: {}]
  %s1 = inlined_call_operand.vmem [shape: f32[14], index: 1, kind: input, shape index: {}]
  %s2 = inlined_call_operand.vmem [shape: f32[8,1024], index: 2, kind: input, shape index: {}, may-alias: {2,6}]
  %s3 = inlined_call_operand.vmem [shape: f32[1024,128], index: 3, kind: input, shape index: {}]
  %s4 = inlined_call_operand.vmem [shape: f32[1,128], index: 4, kind: input, shape index: {}]
  %s5 = inlined_call_operand.vmem [shape: f32[8,128], index: 5, kind: input, shape index: {}]
  %s6 = inlined_call_operand.vmem [shape: f32[8,1024], index: 6, kind: output, shape index: {0}, may-alias: {2,6}]
  %s7 = inlined_call_operand.vmem [shape: f32[1,128], index: 7, kind: output, shape index: {1}]
  %8 = xla_tuple %s6, %s7
  %s9 = sld [smem:[#allocation0]]
  $region54: #{differentiable_autoaug_forward.1} parent=0
    _
  %s11 = ssub.s32 1, %s9
  %s12 = scalar_select 0, %s11, %s9
  $region1: #{differentiable_autoaug_forward.1} parent=0
    #allocation2 [shape = 'u8[512]{0}', space=smem, size = 0x200, scoped, tag = 'input window, operand 0, single buffered']
    #allocation3 [shape = 's32[1]{0}', space=sflag, size = 0x4, scoped, tag = 'scoped memory for differentiable_autoaug_forward.1']
    #allocation4 [shape = 'u8[512]{0}', space=smem, size = 0x200, scoped, tag = 'input window, operand 1, single buffered']
    #allocation5 [shape = 's32[1]{0}', space=sflag, size = 0x4, scoped, tag = 'scoped memory for differentiable_autoaug_forward.1']
    %13 = vsyncpa [#allocation3], 0
    %14 = vsyncpa [#allocation5], 0
    // Predicated region
    $region2: #{differentiable_autoaug_forward.1} parent=1 // pred_check
      _
    $region3: #{differentiable_autoaug_forward.1} parent=1 // pred_check_branch
      %16 = sbr.rel (0) target = $region5
    $region4: #{differentiable_autoaug_forward.1} parent=1 // pred_region
      %s18 = ssub.s32 16, 16
      %19 = vsyncadd [#allocation3], %s18
      %s21 = sshll.u32 %s0, 4
      %s22 = int_to_ptr.vmem [resolvable:$true] %s21
      %24 = dma.vmem_to_smem %s22, 16, [#allocation2], [#allocation3]
    $region5: #{differentiable_autoaug_forward.1} parent=1 // pred_fallthru
      _
    // Predicated region
    $region6: #{differentiable_autoaug_forward.1} parent=1 // pred_check
      _
    $region7: #{differentiable_autoaug_forward.1} parent=1 // pred_check_branch
      %26 = sbr.rel (0) target = $region9
    $region8: #{differentiable_autoaug_forward.1} parent=1 // pred_region
      %s28 = ssub.s32 16, 16
      %29 = vsyncadd [#allocation5], %s28
      %s31 = sshll.u32 %s1, 4
      %s32 = int_to_ptr.vmem [resolvable:$true] %s31
      %34 = dma.vmem_to_smem %s32, 16, [#allocation4], [#allocation5]
    $region9: #{differentiable_autoaug_forward.1} parent=1 // pred_fallthru
      _
    // Predicated region
    $region10: #{differentiable_autoaug_forward.1} parent=1 // pred_check
      _
    $region11: #{differentiable_autoaug_forward.1} parent=1 // pred_check_branch
      %36 = sbr.rel (0) target = $region13
    $region12: #{differentiable_autoaug_forward.1} parent=1 // pred_region
      _
    $region13: #{differentiable_autoaug_forward.1} parent=1 // pred_fallthru
      _
    // Predicated region
    $region14: #{differentiable_autoaug_forward.1} parent=1 // pred_check
      _
    $region15: #{differentiable_autoaug_forward.1} parent=1 // pred_check_branch
      %38 = sbr.rel (0) target = $region17
    $region16: #{differentiable_autoaug_forward.1} parent=1 // pred_region
      _
    $region17: #{differentiable_autoaug_forward.1} parent=1 // pred_fallthru
      _
    // Predicated region
    $region18: #{differentiable_autoaug_forward.1} parent=1 // pred_check
      _
    $region19: #{differentiable_autoaug_forward.1} parent=1 // pred_check_branch
      %40 = sbr.rel (0) target = $region21
    $region20: #{differentiable_autoaug_forward.1} parent=1 // pred_region
      _
    $region21: #{differentiable_autoaug_forward.1} parent=1 // pred_fallthru
      _
    // Predicated region
    $region22: #{differentiable_autoaug_forward.1} parent=1 // pred_check
      _
    $region23: #{differentiable_autoaug_forward.1} parent=1 // pred_check_branch
      %42 = sbr.rel (0) target = $region25
    $region24: #{differentiable_autoaug_forward.1} parent=1 // pred_region
      _
    $region25: #{differentiable_autoaug_forward.1} parent=1 // pred_fallthru
      _
    // Predicated region
    $region26: #{differentiable_autoaug_forward.1} parent=1 // pred_check
      _
    $region27: #{differentiable_autoaug_forward.1} parent=1 // pred_check_branch
      %44 = sbr.rel (0) target = $region29
    $region28: #{differentiable_autoaug_forward.1} parent=1 // pred_region
      %45 = dma.done [#allocation3], 16
    $region29: #{differentiable_autoaug_forward.1} parent=1 // pred_fallthru
      _
    // Predicated region
    $region30: #{differentiable_autoaug_forward.1} parent=1 // pred_check
      _
    $region31: #{differentiable_autoaug_forward.1} parent=1 // pred_check_branch
      %47 = sbr.rel (0) target = $region33
    $region32: #{differentiable_autoaug_forward.1} parent=1 // pred_region
      %48 = dma.done [#allocation5], 16
    $region33: #{differentiable_autoaug_forward.1} parent=1 // pred_fallthru
      _
    %49 = sfence
    %s50 = sld [smem:[#allocation2]]
    %s51 = sld [smem:[#allocation2 + $0x1]]
    %s52 = sld [smem:[#allocation2 + $0x2]]
    %s53 = sld [smem:[#allocation2 + $0x3]]
    %s54 = sld [smem:[#allocation2 + $0x4]]
    %s55 = sld [smem:[#allocation2 + $0x5]]
    %s56 = sld [smem:[#allocation2 + $0x6]]
    %s57 = sld [smem:[#allocation2 + $0x7]]
    %s58 = sld [smem:[#allocation2 + $0x8]]
    %s59 = sld [smem:[#allocation2 + $0x9]]
    %s60 = sld [smem:[#allocation2 + $0xa]]
    %s61 = sld [smem:[#allocation2 + $0xb]]
    %s62 = sld [smem:[#allocation2 + $0xc]]
    %s63 = sld [smem:[#allocation2 + $0xd]]
    %s64 = sld [smem:[#allocation4]]
    %s65 = sld [smem:[#allocation4 + $0x1]]
    %s66 = sld [smem:[#allocation4 + $0x2]]
    %s67 = sld [smem:[#allocation4 + $0x3]]
    %s68 = sld [smem:[#allocation4 + $0x4]]
    %s69 = sld [smem:[#allocation4 + $0x5]]
    %s70 = sld [smem:[#allocation4 + $0x6]]
    %s71 = sld [smem:[#allocation4 + $0x7]]
    %s72 = sld [smem:[#allocation4 + $0x8]]
    %s73 = sld [smem:[#allocation4 + $0x9]]
    %s74 = sld [smem:[#allocation4 + $0xa]]
    %s75 = sld [smem:[#allocation4 + $0xb]]
    %s76 = sld [smem:[#allocation4 + $0xc]]
    %s77 = sld [smem:[#allocation4 + $0xd]]
    %s78 = smul.u32 0, 8
    %s79 = smul.addr %s78, 8
    %s80 = scalar_lea.vmem %s2, %s79
    %v81 = vld [vmem:[%s80] sm:$0xff]
    %v82 = vld [vmem:[%s80 + $0x8] sm:$0xff]
    %v83 = vld [vmem:[%s80 + $0x10] sm:$0xff]
    %v84 = vld [vmem:[%s80 + $0x18] sm:$0xff]
    %v85 = vld [vmem:[%s80 + $0x20] sm:$0xff]
    %v86 = vld [vmem:[%s80 + $0x28] sm:$0xff]
    %v87 = vld [vmem:[%s80 + $0x30] sm:$0xff]
    %v88 = vld [vmem:[%s80 + $0x38] sm:$0xff]
    %v89 = vstv %s50
    %v90 = vmul.f32 %v81, %v89
    %v91 = vmul.f32 %v82, %v89
    %v92 = vmul.f32 %v83, %v89
    %v93 = vmul.f32 %v84, %v89
    %v94 = vmul.f32 %v85, %v89
    %v95 = vmul.f32 %v86, %v89
    %v96 = vmul.f32 %v87, %v89
    %v97 = vmul.f32 %v88, %v89
    %v98 = vstv %s64
    %v99 = vadd.f32 %v90, %v98
    %v100 = vadd.f32 %v91, %v98
    %v101 = vadd.f32 %v92, %v98
    %v102 = vadd.f32 %v93, %v98
    %v103 = vadd.f32 %v94, %v98
    %v104 = vadd.f32 %v95, %v98
    %v105 = vadd.f32 %v96, %v98
    %v106 = vadd.f32 %v97, %v98
    %v107 = vmax.f32 %v99, 0.0
    %v108 = vmax.f32 %v100, 0.0
    %v109 = vmax.f32 %v101, 0.0
    %v110 = vmax.f32 %v102, 0.0
    %v111 = vmax.f32 %v103, 0.0
    %v112 = vmax.f32 %v104, 0.0
    %v113 = vmax.f32 %v105, 0.0
    %v114 = vmax.f32 %v106, 0.0
    %v115 = vmin.f32 %v107, 1.0
    %v116 = vmin.f32 %v108, 1.0
    %v117 = vmin.f32 %v109, 1.0
    %v118 = vmin.f32 %v110, 1.0
    %v119 = vmin.f32 %v111, 1.0
    %v120 = vmin.f32 %v112, 1.0
    %v121 = vmin.f32 %v113, 1.0
    %v122 = vmin.f32 %v114, 1.0
    %v123 = vstv %s51
    %v124 = vmul.f32 %v115, %v123
    %v125 = vmul.f32 %v116, %v123
    %v126 = vmul.f32 %v117, %v123
    %v127 = vmul.f32 %v118, %v123
    %v128 = vmul.f32 %v119, %v123
    %v129 = vmul.f32 %v120, %v123
    %v130 = vmul.f32 %v121, %v123
    %v131 = vmul.f32 %v122, %v123
    %v132 = vstv %s65
    %v133 = vadd.f32 %v124, %v132
    %v134 = vadd.f32 %v125, %v132
    %v135 = vadd.f32 %v126, %v132
    %v136 = vadd.f32 %v127, %v132
    %v137 = vadd.f32 %v128, %v132
    %v138 = vadd.f32 %v129, %v132
    %v139 = vadd.f32 %v130, %v132
    %v140 = vadd.f32 %v131, %v132
    %v141 = vmax.f32 %v133, 0.0
    %v142 = vmax.f32 %v134, 0.0
    %v143 = vmax.f32 %v135, 0.0
    %v144 = vmax.f32 %v136, 0.0
    %v145 = vmax.f32 %v137, 0.0
    %v146 = vmax.f32 %v138, 0.0
    %v147 = vmax.f32 %v139, 0.0
    %v148 = vmax.f32 %v140, 0.0
    %v149 = vmin.f32 %v141, 1.0
    %v150 = vmin.f32 %v142, 1.0
    %v151 = vmin.f32 %v143, 1.0
    %v152 = vmin.f32 %v144, 1.0
    %v153 = vmin.f32 %v145, 1.0
    %v154 = vmin.f32 %v146, 1.0
    %v155 = vmin.f32 %v147, 1.0
    %v156 = vmin.f32 %v148, 1.0
    %v157 = vstv %s52
    %v158 = vmul.f32 %v149, %v157
    %v159 = vmul.f32 %v150, %v157
    %v160 = vmul.f32 %v151, %v157
    %v161 = vmul.f32 %v152, %v157
    %v162 = vmul.f32 %v153, %v157
    %v163 = vmul.f32 %v154, %v157
    %v164 = vmul.f32 %v155, %v157
    %v165 = vmul.f32 %v156, %v157
    %v166 = vstv %s66
    %v167 = vadd.f32 %v158, %v166
    %v168 = vadd.f32 %v159, %v166
    %v169 = vadd.f32 %v160, %v166
    %v170 = vadd.f32 %v161, %v166
    %v171 = vadd.f32 %v162, %v166
    %v172 = vadd.f32 %v163, %v166
    %v173 = vadd.f32 %v164, %v166
    %v174 = vadd.f32 %v165, %v166
    %v175 = vmax.f32 %v167, 0.0
    %v176 = vmax.f32 %v168, 0.0
    %v177 = vmax.f32 %v169, 0.0
    %v178 = vmax.f32 %v170, 0.0
    %v179 = vmax.f32 %v171, 0.0
    %v180 = vmax.f32 %v172, 0.0
    %v181 = vmax.f32 %v173, 0.0
    %v182 = vmax.f32 %v174, 0.0
    %v183 = vmin.f32 %v175, 1.0
    %v184 = vmin.f32 %v176, 1.0
    %v185 = vmin.f32 %v177, 1.0
    %v186 = vmin.f32 %v178, 1.0
    %v187 = vmin.f32 %v179, 1.0
    %v188 = vmin.f32 %v180, 1.0
    %v189 = vmin.f32 %v181, 1.0
    %v190 = vmin.f32 %v182, 1.0
    %v191 = vstv %s53
    %v192 = vmul.f32 %v183, %v191
    %v193 = vmul.f32 %v184, %v191
    %v194 = vmul.f32 %v185, %v191
    %v195 = vmul.f32 %v186, %v191
    %v196 = vmul.f32 %v187, %v191
    %v197 = vmul.f32 %v188, %v191
    %v198 = vmul.f32 %v189, %v191
    %v199 = vmul.f32 %v190, %v191
    %v200 = vstv %s67
    %v201 = vadd.f32 %v192, %v200
    %v202 = vadd.f32 %v193, %v200
    %v203 = vadd.f32 %v194, %v200
    %v204 = vadd.f32 %v195, %v200
    %v205 = vadd.f32 %v196, %v200
    %v206 = vadd.f32 %v197, %v200
    %v207 = vadd.f32 %v198, %v200
    %v208 = vadd.f32 %v199, %v200
    %v209 = vmax.f32 %v201, 0.0
    %v210 = vmax.f32 %v202, 0.0
    %v211 = vmax.f32 %v203, 0.0
    %v212 = vmax.f32 %v204, 0.0
    %v213 = vmax.f32 %v205, 0.0
    %v214 = vmax.f32 %v206, 0.0
    %v215 = vmax.f32 %v207, 0.0
    %v216 = vmax.f32 %v208, 0.0
    %v217 = vmin.f32 %v209, 1.0
    %v218 = vmin.f32 %v210, 1.0
    %v219 = vmin.f32 %v211, 1.0
    %v220 = vmin.f32 %v212, 1.0
    %v221 = vmin.f32 %v213, 1.0
    %v222 = vmin.f32 %v214, 1.0
    %v223 = vmin.f32 %v215, 1.0
    %v224 = vmin.f32 %v216, 1.0
    %v225 = vstv %s54
    %v226 = vmul.f32 %v217, %v225
    %v227 = vmul.f32 %v218, %v225
    %v228 = vmul.f32 %v219, %v225
    %v229 = vmul.f32 %v220, %v225
    %v230 = vmul.f32 %v221, %v225
    %v231 = vmul.f32 %v222, %v225
    %v232 = vmul.f32 %v223, %v225
    %v233 = vmul.f32 %v224, %v225
    %v234 = vstv %s68
    %v235 = vadd.f32 %v226, %v234
    %v236 = vadd.f32 %v227, %v234
    %v237 = vadd.f32 %v228, %v234
    %v238 = vadd.f32 %v229, %v234
    %v239 = vadd.f32 %v230, %v234
    %v240 = vadd.f32 %v231, %v234
    %v241 = vadd.f32 %v232, %v234
    %v242 = vadd.f32 %v233, %v234
    %v243 = vmax.f32 %v235, 0.0
    %v244 = vmax.f32 %v236, 0.0
    %v245 = vmax.f32 %v237, 0.0
    %v246 = vmax.f32 %v238, 0.0
    %v247 = vmax.f32 %v239, 0.0
    %v248 = vmax.f32 %v240, 0.0
    %v249 = vmax.f32 %v241, 0.0
    %v250 = vmax.f32 %v242, 0.0
    %v251 = vmin.f32 %v243, 1.0
    %v252 = vmin.f32 %v244, 1.0
    %v253 = vmin.f32 %v245, 1.0
    %v254 = vmin.f32 %v246, 1.0
    %v255 = vmin.f32 %v247, 1.0
    %v256 = vmin.f32 %v248, 1.0
    %v257 = vmin.f32 %v249, 1.0
    %v258 = vmin.f32 %v250, 1.0
    %v259 = vstv %s55
    %v260 = vmul.f32 %v251, %v259
    %v261 = vmul.f32 %v252, %v259
    %v262 = vmul.f32 %v253, %v259
    %v263 = vmul.f32 %v254, %v259
    %v264 = vmul.f32 %v255, %v259
    %v265 = vmul.f32 %v256, %v259
    %v266 = vmul.f32 %v257, %v259
    %v267 = vmul.f32 %v258, %v259
    %v268 = vstv %s69
    %v269 = vadd.f32 %v260, %v268
    %v270 = vadd.f32 %v261, %v268
    %v271 = vadd.f32 %v262, %v268
    %v272 = vadd.f32 %v263, %v268
    %v273 = vadd.f32 %v264, %v268
    %v274 = vadd.f32 %v265, %v268
    %v275 = vadd.f32 %v266, %v268
    %v276 = vadd.f32 %v267, %v268
    %v277 = vmax.f32 %v269, 0.0
    %v278 = vmax.f32 %v270, 0.0
    %v279 = vmax.f32 %v271, 0.0
    %v280 = vmax.f32 %v272, 0.0
    %v281 = vmax.f32 %v273, 0.0
    %v282 = vmax.f32 %v274, 0.0
    %v283 = vmax.f32 %v275, 0.0
    %v284 = vmax.f32 %v276, 0.0
    %v285 = vmin.f32 %v277, 1.0
    %v286 = vmin.f32 %v278, 1.0
    %v287 = vmin.f32 %v279, 1.0
    %v288 = vmin.f32 %v280, 1.0
    %v289 = vmin.f32 %v281, 1.0
    %v290 = vmin.f32 %v282, 1.0
    %v291 = vmin.f32 %v283, 1.0
    %v292 = vmin.f32 %v284, 1.0
    %v293 = vstv %s56
    %v294 = vmul.f32 %v285, %v293
    %v295 = vmul.f32 %v286, %v293
    %v296 = vmul.f32 %v287, %v293
    %v297 = vmul.f32 %v288, %v293
    %v298 = vmul.f32 %v289, %v293
    %v299 = vmul.f32 %v290, %v293
    %v300 = vmul.f32 %v291, %v293
    %v301 = vmul.f32 %v292, %v293
    %v302 = vstv %s70
    %v303 = vadd.f32 %v294, %v302
    %v304 = vadd.f32 %v295, %v302
    %v305 = vadd.f32 %v296, %v302
    %v306 = vadd.f32 %v297, %v302
    %v307 = vadd.f32 %v298, %v302
    %v308 = vadd.f32 %v299, %v302
    %v309 = vadd.f32 %v300, %v302
    %v310 = vadd.f32 %v301, %v302
    %v311 = vmax.f32 %v303, 0.0
    %v312 = vmax.f32 %v304, 0.0
    %v313 = vmax.f32 %v305, 0.0
    %v314 = vmax.f32 %v306, 0.0
    %v315 = vmax.f32 %v307, 0.0
    %v316 = vmax.f32 %v308, 0.0
    %v317 = vmax.f32 %v309, 0.0
    %v318 = vmax.f32 %v310, 0.0
    %v319 = vmin.f32 %v311, 1.0
    %v320 = vmin.f32 %v312, 1.0
    %v321 = vmin.f32 %v313, 1.0
    %v322 = vmin.f32 %v314, 1.0
    %v323 = vmin.f32 %v315, 1.0
    %v324 = vmin.f32 %v316, 1.0
    %v325 = vmin.f32 %v317, 1.0
    %v326 = vmin.f32 %v318, 1.0
    %v327 = vstv %s57
    %v328 = vmul.f32 %v319, %v327
    %v329 = vmul.f32 %v320, %v327
    %v330 = vmul.f32 %v321, %v327
    %v331 = vmul.f32 %v322, %v327
    %v332 = vmul.f32 %v323, %v327
    %v333 = vmul.f32 %v324, %v327
    %v334 = vmul.f32 %v325, %v327
    %v335 = vmul.f32 %v326, %v327
    %v336 = vstv %s71
    %v337 = vadd.f32 %v328, %v336
    %v338 = vadd.f32 %v329, %v336
    %v339 = vadd.f32 %v330, %v336
    %v340 = vadd.f32 %v331, %v336
    %v341 = vadd.f32 %v332, %v336
    %v342 = vadd.f32 %v333, %v336
    %v343 = vadd.f32 %v334, %v336
    %v344 = vadd.f32 %v335, %v336
    %v345 = vmax.f32 %v337, 0.0
    %v346 = vmax.f32 %v338, 0.0
    %v347 = vmax.f32 %v339, 0.0
    %v348 = vmax.f32 %v340, 0.0
    %v349 = vmax.f32 %v341, 0.0
    %v350 = vmax.f32 %v342, 0.0
    %v351 = vmax.f32 %v343, 0.0
    %v352 = vmax.f32 %v344, 0.0
    %v353 = vmin.f32 %v345, 1.0
    %v354 = vmin.f32 %v346, 1.0
    %v355 = vmin.f32 %v347, 1.0
    %v356 = vmin.f32 %v348, 1.0
    %v357 = vmin.f32 %v349, 1.0
    %v358 = vmin.f32 %v350, 1.0
    %v359 = vmin.f32 %v351, 1.0
    %v360 = vmin.f32 %v352, 1.0
    %v361 = vstv %s58
    %v362 = vmul.f32 %v353, %v361
    %v363 = vmul.f32 %v354, %v361
    %v364 = vmul.f32 %v355, %v361
    %v365 = vmul.f32 %v356, %v361
    %v366 = vmul.f32 %v357, %v361
    %v367 = vmul.f32 %v358, %v361
    %v368 = vmul.f32 %v359, %v361
    %v369 = vmul.f32 %v360, %v361
    %v370 = vstv %s72
    %v371 = vadd.f32 %v362, %v370
    %v372 = vadd.f32 %v363, %v370
    %v373 = vadd.f32 %v364, %v370
    %v374 = vadd.f32 %v365, %v370
    %v375 = vadd.f32 %v366, %v370
    %v376 = vadd.f32 %v367, %v370
    %v377 = vadd.f32 %v368, %v370
    %v378 = vadd.f32 %v369, %v370
    %v379 = vmax.f32 %v371, 0.0
    %v380 = vmax.f32 %v372, 0.0
    %v381 = vmax.f32 %v373, 0.0
    %v382 = vmax.f32 %v374, 0.0
    %v383 = vmax.f32 %v375, 0.0
    %v384 = vmax.f32 %v376, 0.0
    %v385 = vmax.f32 %v377, 0.0
    %v386 = vmax.f32 %v378, 0.0
    %v387 = vmin.f32 %v379, 1.0
    %v388 = vmin.f32 %v380, 1.0
    %v389 = vmin.f32 %v381, 1.0
    %v390 = vmin.f32 %v382, 1.0
    %v391 = vmin.f32 %v383, 1.0
    %v392 = vmin.f32 %v384, 1.0
    %v393 = vmin.f32 %v385, 1.0
    %v394 = vmin.f32 %v386, 1.0
    %v395 = vstv %s59
    %v396 = vmul.f32 %v387, %v395
    %v397 = vmul.f32 %v388, %v395
    %v398 = vmul.f32 %v389, %v395
    %v399 = vmul.f32 %v390, %v395
    %v400 = vmul.f32 %v391, %v395
    %v401 = vmul.f32 %v392, %v395
    %v402 = vmul.f32 %v393, %v395
    %v403 = vmul.f32 %v394, %v395
    %v404 = vstv %s73
    %v405 = vadd.f32 %v396, %v404
    %v406 = vadd.f32 %v397, %v404
    %v407 = vadd.f32 %v398, %v404
    %v408 = vadd.f32 %v399, %v404
    %v409 = vadd.f32 %v400, %v404
    %v410 = vadd.f32 %v401, %v404
    %v411 = vadd.f32 %v402, %v404
    %v412 = vadd.f32 %v403, %v404
    %v413 = vmax.f32 %v405, 0.0
    %v414 = vmax.f32 %v406, 0.0
    %v415 = vmax.f32 %v407, 0.0
    %v416 = vmax.f32 %v408, 0.0
    %v417 = vmax.f32 %v409, 0.0
    %v418 = vmax.f32 %v410, 0.0
    %v419 = vmax.f32 %v411, 0.0
    %v420 = vmax.f32 %v412, 0.0
    %v421 = vmin.f32 %v413, 1.0
    %v422 = vmin.f32 %v414, 1.0
    %v423 = vmin.f32 %v415, 1.0
    %v424 = vmin.f32 %v416, 1.0
    %v425 = vmin.f32 %v417, 1.0
    %v426 = vmin.f32 %v418, 1.0
    %v427 = vmin.f32 %v419, 1.0
    %v428 = vmin.f32 %v420, 1.0
    %v429 = vstv %s60
    %v430 = vmul.f32 %v421, %v429
    %v431 = vmul.f32 %v422, %v429
    %v432 = vmul.f32 %v423, %v429
    %v433 = vmul.f32 %v424, %v429
    %v434 = vmul.f32 %v425, %v429
    %v435 = vmul.f32 %v426, %v429
    %v436 = vmul.f32 %v427, %v429
    %v437 = vmul.f32 %v428, %v429
    %v438 = vstv %s74
    %v439 = vadd.f32 %v430, %v438
    %v440 = vadd.f32 %v431, %v438
    %v441 = vadd.f32 %v432, %v438
    %v442 = vadd.f32 %v433, %v438
    %v443 = vadd.f32 %v434, %v438
    %v444 = vadd.f32 %v435, %v438
    %v445 = vadd.f32 %v436, %v438
    %v446 = vadd.f32 %v437, %v438
    %v447 = vmax.f32 %v439, 0.0
    %v448 = vmax.f32 %v440, 0.0
    %v449 = vmax.f32 %v441, 0.0
    %v450 = vmax.f32 %v442, 0.0
    %v451 = vmax.f32 %v443, 0.0
    %v452 = vmax.f32 %v444, 0.0
    %v453 = vmax.f32 %v445, 0.0
    %v454 = vmax.f32 %v446, 0.0
    %v455 = vmin.f32 %v447, 1.0
    %v456 = vmin.f32 %v448, 1.0
    %v457 = vmin.f32 %v449, 1.0
    %v458 = vmin.f32 %v450, 1.0
    %v459 = vmin.f32 %v451, 1.0
    %v460 = vmin.f32 %v452, 1.0
    %v461 = vmin.f32 %v453, 1.0
    %v462 = vmin.f32 %v454, 1.0
    %v463 = vstv %s61
    %v464 = vmul.f32 %v455, %v463
    %v465 = vmul.f32 %v456, %v463
    %v466 = vmul.f32 %v457, %v463
    %v467 = vmul.f32 %v458, %v463
    %v468 = vmul.f32 %v459, %v463
    %v469 = vmul.f32 %v460, %v463
    %v470 = vmul.f32 %v461, %v463
    %v471 = vmul.f32 %v462, %v463
    %v472 = vstv %s75
    %v473 = vadd.f32 %v464, %v472
    %v474 = vadd.f32 %v465, %v472
    %v475 = vadd.f32 %v466, %v472
    %v476 = vadd.f32 %v467, %v472
    %v477 = vadd.f32 %v468, %v472
    %v478 = vadd.f32 %v469, %v472
    %v479 = vadd.f32 %v470, %v472
    %v480 = vadd.f32 %v471, %v472
    %v481 = vmax.f32 %v473, 0.0
    %v482 = vmax.f32 %v474, 0.0
    %v483 = vmax.f32 %v475, 0.0
    %v484 = vmax.f32 %v476, 0.0
    %v485 = vmax.f32 %v477, 0.0
    %v486 = vmax.f32 %v478, 0.0
    %v487 = vmax.f32 %v479, 0.0
    %v488 = vmax.f32 %v480, 0.0
    %v489 = vmin.f32 %v481, 1.0
    %v490 = vmin.f32 %v482, 1.0
    %v491 = vmin.f32 %v483, 1.0
    %v492 = vmin.f32 %v484, 1.0
    %v493 = vmin.f32 %v485, 1.0
    %v494 = vmin.f32 %v486, 1.0
    %v495 = vmin.f32 %v487, 1.0
    %v496 = vmin.f32 %v488, 1.0
    %v497 = vstv %s62
    %v498 = vmul.f32 %v489, %v497
    %v499 = vmul.f32 %v490, %v497
    %v500 = vmul.f32 %v491, %v497
    %v501 = vmul.f32 %v492, %v497
    %v502 = vmul.f32 %v493, %v497
    %v503 = vmul.f32 %v494, %v497
    %v504 = vmul.f32 %v495, %v497
    %v505 = vmul.f32 %v496, %v497
    %v506 = vstv %s76
    %v507 = vadd.f32 %v498, %v506
    %v508 = vadd.f32 %v499, %v506
    %v509 = vadd.f32 %v500, %v506
    %v510 = vadd.f32 %v501, %v506
    %v511 = vadd.f32 %v502, %v506
    %v512 = vadd.f32 %v503, %v506
    %v513 = vadd.f32 %v504, %v506
    %v514 = vadd.f32 %v505, %v506
    %v515 = vmax.f32 %v507, 0.0
    %v516 = vmax.f32 %v508, 0.0
    %v517 = vmax.f32 %v509, 0.0
    %v518 = vmax.f32 %v510, 0.0
    %v519 = vmax.f32 %v511, 0.0
    %v520 = vmax.f32 %v512, 0.0
    %v521 = vmax.f32 %v513, 0.0
    %v522 = vmax.f32 %v514, 0.0
    %v523 = vmin.f32 %v515, 1.0
    %v524 = vmin.f32 %v516, 1.0
    %v525 = vmin.f32 %v517, 1.0
    %v526 = vmin.f32 %v518, 1.0
    %v527 = vmin.f32 %v519, 1.0
    %v528 = vmin.f32 %v520, 1.0
    %v529 = vmin.f32 %v521, 1.0
    %v530 = vmin.f32 %v522, 1.0
    %v531 = vstv %s63
    %v532 = vmul.f32 %v523, %v531
    %v533 = vmul.f32 %v524, %v531
    %v534 = vmul.f32 %v525, %v531
    %v535 = vmul.f32 %v526, %v531
    %v536 = vmul.f32 %v527, %v531
    %v537 = vmul.f32 %v528, %v531
    %v538 = vmul.f32 %v529, %v531
    %v539 = vmul.f32 %v530, %v531
    %v540 = vstv %s77
    %v541 = vadd.f32 %v532, %v540
    %v542 = vadd.f32 %v533, %v540
    %v543 = vadd.f32 %v534, %v540
    %v544 = vadd.f32 %v535, %v540
    %v545 = vadd.f32 %v536, %v540
    %v546 = vadd.f32 %v537, %v540
    %v547 = vadd.f32 %v538, %v540
    %v548 = vadd.f32 %v539, %v540
    %v549 = vmax.f32 %v541, 0.0
    %v550 = vmax.f32 %v542, 0.0
    %v551 = vmax.f32 %v543, 0.0
    %v552 = vmax.f32 %v544, 0.0
    %v553 = vmax.f32 %v545, 0.0
    %v554 = vmax.f32 %v546, 0.0
    %v555 = vmax.f32 %v547, 0.0
    %v556 = vmax.f32 %v548, 0.0
    %v557 = vmin.f32 %v549, 1.0
    %v558 = vmin.f32 %v550, 1.0
    %v559 = vmin.f32 %v551, 1.0
    %v560 = vmin.f32 %v552, 1.0
    %v561 = vmin.f32 %v553, 1.0
    %v562 = vmin.f32 %v554, 1.0
    %v563 = vmin.f32 %v555, 1.0
    %v564 = vmin.f32 %v556, 1.0
    %s565 = smul.addr %s78, 8
    %s566 = scalar_lea.vmem %s6, %s565
    %567 = vst [vmem:[%s566] sm:$0xff] %v557
    %568 = vst [vmem:[%s566 + $0x8] sm:$0xff] %v558
    %569 = vst [vmem:[%s566 + $0x10] sm:$0xff] %v559
    %570 = vst [vmem:[%s566 + $0x18] sm:$0xff] %v560
    %571 = vst [vmem:[%s566 + $0x20] sm:$0xff] %v561
    %572 = vst [vmem:[%s566 + $0x28] sm:$0xff] %v562
    %573 = vst [vmem:[%s566 + $0x30] sm:$0xff] %v563
    %574 = vst [vmem:[%s566 + $0x38] sm:$0xff] %v564
    %v575 = vld [vmem:[%s6] sm:$0xff]
    %v576 = vld [vmem:[%s6 + $0x8] sm:$0xff]
    %v577 = vld [vmem:[%s6 + $0x10] sm:$0xff]
    %v578 = vld [vmem:[%s6 + $0x18] sm:$0xff]
    %v579 = vld [vmem:[%s6 + $0x20] sm:$0xff]
    %v580 = vld [vmem:[%s6 + $0x28] sm:$0xff]
    %v581 = vld [vmem:[%s6 + $0x30] sm:$0xff]
    %v582 = vld [vmem:[%s6 + $0x38] sm:$0xff]
    %v583 = vld [vmem:[%s3] sm:$0xff]
    %v584 = vld [vmem:[%s3 + $0x8] sm:$0xff]
    %v585 = vld [vmem:[%s3 + $0x10] sm:$0xff]
    %v586 = vld [vmem:[%s3 + $0x18] sm:$0xff]
    %v587 = vld [vmem:[%s3 + $0x20] sm:$0xff]
    %v588 = vld [vmem:[%s3 + $0x28] sm:$0xff]
    %v589 = vld [vmem:[%s3 + $0x30] sm:$0xff]
    %v590 = vld [vmem:[%s3 + $0x38] sm:$0xff]
    %v591 = vld [vmem:[%s3 + $0x40] sm:$0xff]
    %v592 = vld [vmem:[%s3 + $0x48] sm:$0xff]
    %v593 = vld [vmem:[%s3 + $0x50] sm:$0xff]
    %v594 = vld [vmem:[%s3 + $0x58] sm:$0xff]
    %v595 = vld [vmem:[%s3 + $0x60] sm:$0xff]
    %v596 = vld [vmem:[%s3 + $0x68] sm:$0xff]
    %v597 = vld [vmem:[%s3 + $0x70] sm:$0xff]
    %v598 = vld [vmem:[%s3 + $0x78] sm:$0xff]
    %v599 = vld [vmem:[%s3 + $0x80] sm:$0xff]
    %v600 = vld [vmem:[%s3 + $0x88] sm:$0xff]
    %v601 = vld [vmem:[%s3 + $0x90] sm:$0xff]
    %v602 = vld [vmem:[%s3 + $0x98] sm:$0xff]
    %v603 = vld [vmem:[%s3 + $0xa0] sm:$0xff]
    %v604 = vld [vmem:[%s3 + $0xa8] sm:$0xff]
    %v605 = vld [vmem:[%s3 + $0xb0] sm:$0xff]
    %v606 = vld [vmem:[%s3 + $0xb8] sm:$0xff]
    %v607 = vld [vmem:[%s3 + $0xc0] sm:$0xff]
    %v608 = vld [vmem:[%s3 + $0xc8] sm:$0xff]
    %v609 = vld [vmem:[%s3 + $0xd0] sm:$0xff]
    %v610 = vld [vmem:[%s3 + $0xd8] sm:$0xff]
    %v611 = vld [vmem:[%s3 + $0xe0] sm:$0xff]
    %v612 = vld [vmem:[%s3 + $0xe8] sm:$0xff]
    %v613 = vld [vmem:[%s3 + $0xf0] sm:$0xff]
    %v614 = vld [vmem:[%s3 + $0xf8] sm:$0xff]
    %v615 = vld [vmem:[%s3 + $0x100] sm:$0xff]
    %v616 = vld [vmem:[%s3 + $0x108] sm:$0xff]
    %v617 = vld [vmem:[%s3 + $0x110] sm:$0xff]
    %v618 = vld [vmem:[%s3 + $0x118] sm:$0xff]
    %v619 = vld [vmem:[%s3 + $0x120] sm:$0xff]
    %v620 = vld [vmem:[%s3 + $0x128] sm:$0xff]
    %v621 = vld [vmem:[%s3 + $0x130] sm:$0xff]
    %v622 = vld [vmem:[%s3 + $0x138] sm:$0xff]
    %v623 = vld [vmem:[%s3 + $0x140] sm:$0xff]
    %v624 = vld [vmem:[%s3 + $0x148] sm:$0xff]
    %v625 = vld [vmem:[%s3 + $0x150] sm:$0xff]
    %v626 = vld [vmem:[%s3 + $0x158] sm:$0xff]
    %v627 = vld [vmem:[%s3 + $0x160] sm:$0xff]
    %v628 = vld [vmem:[%s3 + $0x168] sm:$0xff]
    %v629 = vld [vmem:[%s3 + $0x170] sm:$0xff]
    %v630 = vld [vmem:[%s3 + $0x178] sm:$0xff]
    %v631 = vld [vmem:[%s3 + $0x180] sm:$0xff]
    %v632 = vld [vmem:[%s3 + $0x188] sm:$0xff]
    %v633 = vld [vmem:[%s3 + $0x190] sm:$0xff]
    %v634 = vld [vmem:[%s3 + $0x198] sm:$0xff]
    %v635 = vld [vmem:[%s3 + $0x1a0] sm:$0xff]
    %v636 = vld [vmem:[%s3 + $0x1a8] sm:$0xff]
    %v637 = vld [vmem:[%s3 + $0x1b0] sm:$0xff]
    %v638 = vld [vmem:[%s3 + $0x1b8] sm:$0xff]
    %v639 = vld [vmem:[%s3 + $0x1c0] sm:$0xff]
    %v640 = vld [vmem:[%s3 + $0x1c8] sm:$0xff]
    %v641 = vld [vmem:[%s3 + $0x1d0] sm:$0xff]
    %v642 = vld [vmem:[%s3 + $0x1d8] sm:$0xff]
    %v643 = vld [vmem:[%s3 + $0x1e0] sm:$0xff]
    %v644 = vld [vmem:[%s3 + $0x1e8] sm:$0xff]
    %v645 = vld [vmem:[%s3 + $0x1f0] sm:$0xff]
    %v646 = vld [vmem:[%s3 + $0x1f8] sm:$0xff]
    %v647 = vld [vmem:[%s3 + $0x200] sm:$0xff]
    %v648 = vld [vmem:[%s3 + $0x208] sm:$0xff]
    %v649 = vld [vmem:[%s3 + $0x210] sm:$0xff]
    %v650 = vld [vmem:[%s3 + $0x218] sm:$0xff]
    %v651 = vld [vmem:[%s3 + $0x220] sm:$0xff]
    %v652 = vld [vmem:[%s3 + $0x228] sm:$0xff]
    %v653 = vld [vmem:[%s3 + $0x230] sm:$0xff]
    %v654 = vld [vmem:[%s3 + $0x238] sm:$0xff]
    %v655 = vld [vmem:[%s3 + $0x240] sm:$0xff]
    %v656 = vld [vmem:[%s3 + $0x248] sm:$0xff]
    %v657 = vld [vmem:[%s3 + $0x250] sm:$0xff]
    %v658 = vld [vmem:[%s3 + $0x258] sm:$0xff]
    %v659 = vld [vmem:[%s3 + $0x260] sm:$0xff]
    %v660 = vld [vmem:[%s3 + $0x268] sm:$0xff]
    %v661 = vld [vmem:[%s3 + $0x270] sm:$0xff]
    %v662 = vld [vmem:[%s3 + $0x278] sm:$0xff]
    %v663 = vld [vmem:[%s3 + $0x280] sm:$0xff]
    %v664 = vld [vmem:[%s3 + $0x288] sm:$0xff]
    %v665 = vld [vmem:[%s3 + $0x290] sm:$0xff]
    %v666 = vld [vmem:[%s3 + $0x298] sm:$0xff]
    %v667 = vld [vmem:[%s3 + $0x2a0] sm:$0xff]
    %v668 = vld [vmem:[%s3 + $0x2a8] sm:$0xff]
    %v669 = vld [vmem:[%s3 + $0x2b0] sm:$0xff]
    %v670 = vld [vmem:[%s3 + $0x2b8] sm:$0xff]
    %v671 = vld [vmem:[%s3 + $0x2c0] sm:$0xff]
    %v672 = vld [vmem:[%s3 + $0x2c8] sm:$0xff]
    %v673 = vld [vmem:[%s3 + $0x2d0] sm:$0xff]
    %v674 = vld [vmem:[%s3 + $0x2d8] sm:$0xff]
    %v675 = vld [vmem:[%s3 + $0x2e0] sm:$0xff]
    %v676 = vld [vmem:[%s3 + $0x2e8] sm:$0xff]
    %v677 = vld [vmem:[%s3 + $0x2f0] sm:$0xff]
    %v678 = vld [vmem:[%s3 + $0x2f8] sm:$0xff]
    %v679 = vld [vmem:[%s3 + $0x300] sm:$0xff]
    %v680 = vld [vmem:[%s3 + $0x308] sm:$0xff]
    %v681 = vld [vmem:[%s3 + $0x310] sm:$0xff]
    %v682 = vld [vmem:[%s3 + $0x318] sm:$0xff]
    %v683 = vld [vmem:[%s3 + $0x320] sm:$0xff]
    %v684 = vld [vmem:[%s3 + $0x328] sm:$0xff]
    %v685 = vld [vmem:[%s3 + $0x330] sm:$0xff]
    %v686 = vld [vmem:[%s3 + $0x338] sm:$0xff]
    %v687 = vld [vmem:[%s3 + $0x340] sm:$0xff]
    %v688 = vld [vmem:[%s3 + $0x348] sm:$0xff]
    %v689 = vld [vmem:[%s3 + $0x350] sm:$0xff]
    %v690 = vld [vmem:[%s3 + $0x358] sm:$0xff]
    %v691 = vld [vmem:[%s3 + $0x360] sm:$0xff]
    %v692 = vld [vmem:[%s3 + $0x368] sm:$0xff]
    %v693 = vld [vmem:[%s3 + $0x370] sm:$0xff]
    %v694 = vld [vmem:[%s3 + $0x378] sm:$0xff]
    %v695 = vld [vmem:[%s3 + $0x380] sm:$0xff]
    %v696 = vld [vmem:[%s3 + $0x388] sm:$0xff]
    %v697 = vld [vmem:[%s3 + $0x390] sm:$0xff]
    %v698 = vld [vmem:[%s3 + $0x398] sm:$0xff]
    %v699 = vld [vmem:[%s3 + $0x3a0] sm:$0xff]
    %v700 = vld [vmem:[%s3 + $0x3a8] sm:$0xff]
    %v701 = vld [vmem:[%s3 + $0x3b0] sm:$0xff]
    %v702 = vld [vmem:[%s3 + $0x3b8] sm:$0xff]
    %v703 = vld [vmem:[%s3 + $0x3c0] sm:$0xff]
    %v704 = vld [vmem:[%s3 + $0x3c8] sm:$0xff]
    %v705 = vld [vmem:[%s3 + $0x3d0] sm:$0xff]
    %v706 = vld [vmem:[%s3 + $0x3d8] sm:$0xff]
    %v707 = vld [vmem:[%s3 + $0x3e0] sm:$0xff]
    %v708 = vld [vmem:[%s3 + $0x3e8] sm:$0xff]
    %v709 = vld [vmem:[%s3 + $0x3f0] sm:$0xff]
    %v710 = vld [vmem:[%s3 + $0x3f8] sm:$0xff]
    %v711 = vld [vmem:[%s4] sm:$0x1]
    %v713 = vlaneseq
    %v714 = vshrl.u32 %v713, 7
    %v715 = vsub.s32 0, %v714
    %v716 = vrot.slane %v711, %v715
    %718 = vmatprep.subr.mxu0 0.0
    %719 = vmatpush1.msra.mxu0 %v583
    %720 = vmatprep.subr.mxu0 0.0
    %721 = vmatpush1.msra.mxu0 %v584
    %722 = vmatprep.subr.mxu0 0.0
    %723 = vmatpush1.msra.mxu0 %v585
    %724 = vmatprep.subr.mxu0 0.0
    %725 = vmatpush1.msra.mxu0 %v586
    %726 = vmatprep.subr.mxu0 0.0
    %727 = vmatpush1.msra.mxu0 %v587
    %728 = vmatprep.subr.mxu0 0.0
    %729 = vmatpush1.msra.mxu0 %v588
    %730 = vmatprep.subr.mxu0 0.0
    %731 = vmatpush1.msra.mxu0 %v589
    %732 = vmatprep.subr.mxu0 0.0
    %733 = vmatpush1.msra.mxu0 %v590
    %734 = vmatprep.subr.mxu0 0.0
    %735 = vmatpush1.msra.mxu0 %v591
    %736 = vmatprep.subr.mxu0 0.0
    %737 = vmatpush1.msra.mxu0 %v592
    %738 = vmatprep.subr.mxu0 0.0
    %739 = vmatpush1.msra.mxu0 %v593
    %740 = vmatprep.subr.mxu0 0.0
    %741 = vmatpush1.msra.mxu0 %v594
    %742 = vmatprep.subr.mxu0 0.0
    %743 = vmatpush1.msra.mxu0 %v595
    %744 = vmatprep.subr.mxu0 0.0
    %745 = vmatpush1.msra.mxu0 %v596
    %746 = vmatprep.subr.mxu0 0.0
    %747 = vmatpush1.msra.mxu0 %v597
    %748 = vmatprep.subr.mxu0 0.0
    %749 = vmatpush1.msra.mxu0 %v598
    %750 = vmatprep.subr.mxu0 0.0
    %751 = vmatpush1.msra.mxu0 %v599
    %752 = vmatprep.subr.mxu0 0.0
    %753 = vmatpush1.msra.mxu0 %v600
    %754 = vmatprep.subr.mxu0 0.0
    %755 = vmatpush1.msra.mxu0 %v601
    %756 = vmatprep.subr.mxu0 0.0
    %757 = vmatpush1.msra.mxu0 %v602
    %758 = vmatprep.subr.mxu0 0.0
    %759 = vmatpush1.msra.mxu0 %v603
    %760 = vmatprep.subr.mxu0 0.0
    %761 = vmatpush1.msra.mxu0 %v604
    %762 = vmatprep.subr.mxu0 0.0
    %763 = vmatpush1.msra.mxu0 %v605
    %764 = vmatprep.subr.mxu0 0.0
    %765 = vmatpush1.msra.mxu0 %v606
    %766 = vmatprep.subr.mxu0 0.0
    %767 = vmatpush1.msra.mxu0 %v607
    %768 = vmatprep.subr.mxu0 0.0
    %769 = vmatpush1.msra.mxu0 %v608
    %770 = vmatprep.subr.mxu0 0.0
    %771 = vmatpush1.msra.mxu0 %v609
    %772 = vmatprep.subr.mxu0 0.0
    %773 = vmatpush1.msra.mxu0 %v610
    %774 = vmatprep.subr.mxu0 0.0
    %775 = vmatpush1.msra.mxu0 %v611
    %776 = vmatprep.subr.mxu0 0.0
    %777 = vmatpush1.msra.mxu0 %v612
    %778 = vmatprep.subr.mxu0 0.0
    %779 = vmatpush1.msra.mxu0 %v613
    %780 = vmatprep.subr.mxu0 0.0
    %781 = vmatpush1.msra.mxu0 %v614
    %782 = vmatprep.mubr.f32.mxu0 %v576
    %783 = vmatmul.mubr.f32.gmra.mrb[0].mxu0 %v575
    %v784 = vpop.f32.mrb[0].mxu0
    %v785 = vadd.f32 %v716, %v784
    %v786 = vpop.f32.mrb[0].mxu0
    %787 = vdwg.mxu0
    %788 = vmatprep.subr.mxu0 0.0
    %789 = vmatpush1.msra.mxu0 %v615
    %790 = vmatprep.subr.mxu0 0.0
    %791 = vmatpush1.msra.mxu0 %v616
    %792 = vmatprep.subr.mxu0 0.0
    %793 = vmatpush1.msra.mxu0 %v617
    %794 = vmatprep.subr.mxu0 0.0
    %795 = vmatpush1.msra.mxu0 %v618
    %796 = vmatprep.subr.mxu0 0.0
    %797 = vmatpush1.msra.mxu0 %v619
    %798 = vmatprep.subr.mxu0 0.0
    %799 = vmatpush1.msra.mxu0 %v620
    %800 = vmatprep.subr.mxu0 0.0
    %801 = vmatpush1.msra.mxu0 %v621
    %802 = vmatprep.subr.mxu0 0.0
    %803 = vmatpush1.msra.mxu0 %v622
    %804 = vmatprep.subr.mxu0 0.0
    %805 = vmatpush1.msra.mxu0 %v623
    %806 = vmatprep.subr.mxu0 0.0
    %807 = vmatpush1.msra.mxu0 %v624
    %808 = vmatprep.subr.mxu0 0.0
    %809 = vmatpush1.msra.mxu0 %v625
    %810 = vmatprep.subr.mxu0 0.0
    %811 = vmatpush1.msra.mxu0 %v626
    %812 = vmatprep.subr.mxu0 0.0
    %813 = vmatpush1.msra.mxu0 %v627
    %814 = vmatprep.subr.mxu0 0.0
    %815 = vmatpush1.msra.mxu0 %v628
    %816 = vmatprep.subr.mxu0 0.0
    %817 = vmatpush1.msra.mxu0 %v629
    %818 = vmatprep.subr.mxu0 0.0
    %819 = vmatpush1.msra.mxu0 %v630
    %820 = vmatprep.subr.mxu0 0.0
    %821 = vmatpush1.msra.mxu0 %v631
    %822 = vmatprep.subr.mxu0 0.0
    %823 = vmatpush1.msra.mxu0 %v632
    %824 = vmatprep.subr.mxu0 0.0
    %825 = vmatpush1.msra.mxu0 %v633
    %826 = vmatprep.subr.mxu0 0.0
    %827 = vmatpush1.msra.mxu0 %v634
    %828 = vmatprep.subr.mxu0 0.0
    %829 = vmatpush1.msra.mxu0 %v635
    %830 = vmatprep.subr.mxu0 0.0
    %831 = vmatpush1.msra.mxu0 %v636
    %832 = vmatprep.subr.mxu0 0.0
    %833 = vmatpush1.msra.mxu0 %v637
    %834 = vmatprep.subr.mxu0 0.0
    %835 = vmatpush1.msra.mxu0 %v638
    %836 = vmatprep.subr.mxu0 0.0
    %837 = vmatpush1.msra.mxu0 %v639
    %838 = vmatprep.subr.mxu0 0.0
    %839 = vmatpush1.msra.mxu0 %v640
    %840 = vmatprep.subr.mxu0 0.0
    %841 = vmatpush1.msra.mxu0 %v641
    %842 = vmatprep.subr.mxu0 0.0
    %843 = vmatpush1.msra.mxu0 %v642
    %844 = vmatprep.subr.mxu0 0.0
    %845 = vmatpush1.msra.mxu0 %v643
    %846 = vmatprep.subr.mxu0 0.0
    %847 = vmatpush1.msra.mxu0 %v644
    %848 = vmatprep.subr.mxu0 0.0
    %849 = vmatpush1.msra.mxu0 %v645
    %850 = vmatprep.subr.mxu0 0.0
    %851 = vmatpush1.msra.mxu0 %v646
    %852 = vmatprep.mubr.f32.mxu0 %v578
    %853 = vmatmul.mubr.f32.gmra.mrb[0].mxu0 %v577
    %v854 = vpop.f32.mrb[0].mxu0
    %v855 = vadd.f32 %v785, %v854
    %v856 = vpop.f32.mrb[0].mxu0
    %857 = vdwg.mxu0
    %858 = vmatprep.subr.mxu0 0.0
    %859 = vmatpush1.msra.mxu0 %v647
    %860 = vmatprep.subr.mxu0 0.0
    %861 = vmatpush1.msra.mxu0 %v648
    %862 = vmatprep.subr.mxu0 0.0
    %863 = vmatpush1.msra.mxu0 %v649
    %864 = vmatprep.subr.mxu0 0.0
    %865 = vmatpush1.msra.mxu0 %v650
    %866 = vmatprep.subr.mxu0 0.0
    %867 = vmatpush1.msra.mxu0 %v651
    %868 = vmatprep.subr.mxu0 0.0
    %869 = vmatpush1.msra.mxu0 %v652
    %870 = vmatprep.subr.mxu0 0.0
    %871 = vmatpush1.msra.mxu0 %v653
    %872 = vmatprep.subr.mxu0 0.0
    %873 = vmatpush1.msra.mxu0 %v654
    %874 = vmatprep.subr.mxu0 0.0
    %875 = vmatpush1.msra.mxu0 %v655
    %876 = vmatprep.subr.mxu0 0.0
    %877 = vmatpush1.msra.mxu0 %v656
    %878 = vmatprep.subr.mxu0 0.0
    %879 = vmatpush1.msra.mxu0 %v657
    %880 = vmatprep.subr.mxu0 0.0
    %881 = vmatpush1.msra.mxu0 %v658
    %882 = vmatprep.subr.mxu0 0.0
    %883 = vmatpush1.msra.mxu0 %v659
    %884 = vmatprep.subr.mxu0 0.0
    %885 = vmatpush1.msra.mxu0 %v660
    %886 = vmatprep.subr.mxu0 0.0
    %887 = vmatpush1.msra.mxu0 %v661
    %888 = vmatprep.subr.mxu0 0.0
    %889 = vmatpush1.msra.mxu0 %v662
    %890 = vmatprep.subr.mxu0 0.0
    %891 = vmatpush1.msra.mxu0 %v663
    %892 = vmatprep.subr.mxu0 0.0
    %893 = vmatpush1.msra.mxu0 %v664
    %894 = vmatprep.subr.mxu0 0.0
    %895 = vmatpush1.msra.mxu0 %v665
    %896 = vmatprep.subr.mxu0 0.0
    %897 = vmatpush1.msra.mxu0 %v666
    %898 = vmatprep.subr.mxu0 0.0
    %899 = vmatpush1.msra.mxu0 %v667
    %900 = vmatprep.subr.mxu0 0.0
    %901 = vmatpush1.msra.mxu0 %v668
    %902 = vmatprep.subr.mxu0 0.0
    %903 = vmatpush1.msra.mxu0 %v669
    %904 = vmatprep.subr.mxu0 0.0
    %905 = vmatpush1.msra.mxu0 %v670
    %906 = vmatprep.subr.mxu0 0.0
    %907 = vmatpush1.msra.mxu0 %v671
    %908 = vmatprep.subr.mxu0 0.0
    %909 = vmatpush1.msra.mxu0 %v672
    %910 = vmatprep.subr.mxu0 0.0
    %911 = vmatpush1.msra.mxu0 %v673
    %912 = vmatprep.subr.mxu0 0.0
    %913 = vmatpush1.msra.mxu0 %v674
    %914 = vmatprep.subr.mxu0 0.0
    %915 = vmatpush1.msra.mxu0 %v675
    %916 = vmatprep.subr.mxu0 0.0
    %917 = vmatpush1.msra.mxu0 %v676
    %918 = vmatprep.subr.mxu0 0.0
    %919 = vmatpush1.msra.mxu0 %v677
    %920 = vmatprep.subr.mxu0 0.0
    %921 = vmatpush1.msra.mxu0 %v678
    %922 = vmatprep.mubr.f32.mxu0 %v580
    %923 = vmatmul.mubr.f32.gmra.mrb[0].mxu0 %v579
    %v924 = vpop.f32.mrb[0].mxu0
    %v925 = vadd.f32 %v855, %v924
    %v926 = vpop.f32.mrb[0].mxu0
    %927 = vdwg.mxu0
    %928 = vmatprep.subr.mxu0 0.0
    %929 = vmatpush1.msra.mxu0 %v679
    %930 = vmatprep.subr.mxu0 0.0
    %931 = vmatpush1.msra.mxu0 %v680
    %932 = vmatprep.subr.mxu0 0.0
    %933 = vmatpush1.msra.mxu0 %v681
    %934 = vmatprep.subr.mxu0 0.0
    %935 = vmatpush1.msra.mxu0 %v682
    %936 = vmatprep.subr.mxu0 0.0
    %937 = vmatpush1.msra.mxu0 %v683
    %938 = vmatprep.subr.mxu0 0.0
    %939 = vmatpush1.msra.mxu0 %v684
    %940 = vmatprep.subr.mxu0 0.0
    %941 = vmatpush1.msra.mxu0 %v685
    %942 = vmatprep.subr.mxu0 0.0
    %943 = vmatpush1.msra.mxu0 %v686
    %944 = vmatprep.subr.mxu0 0.0
    %945 = vmatpush1.msra.mxu0 %v687
    %946 = vmatprep.subr.mxu0 0.0
    %947 = vmatpush1.msra.mxu0 %v688
    %948 = vmatprep.subr.mxu0 0.0
    %949 = vmatpush1.msra.mxu0 %v689
    %950 = vmatprep.subr.mxu0 0.0
    %951 = vmatpush1.msra.mxu0 %v690
    %952 = vmatprep.subr.mxu0 0.0
    %953 = vmatpush1.msra.mxu0 %v691
    %954 = vmatprep.subr.mxu0 0.0
    %955 = vmatpush1.msra.mxu0 %v692
    %956 = vmatprep.subr.mxu0 0.0
    %957 = vmatpush1.msra.mxu0 %v693
    %958 = vmatprep.subr.mxu0 0.0
    %959 = vmatpush1.msra.mxu0 %v694
    %960 = vmatprep.subr.mxu0 0.0
    %961 = vmatpush1.msra.mxu0 %v695
    %962 = vmatprep.subr.mxu0 0.0
    %963 = vmatpush1.msra.mxu0 %v696
    %964 = vmatprep.subr.mxu0 0.0
    %965 = vmatpush1.msra.mxu0 %v697
    %966 = vmatprep.subr.mxu0 0.0
    %967 = vmatpush1.msra.mxu0 %v698
    %968 = vmatprep.subr.mxu0 0.0
    %969 = vmatpush1.msra.mxu0 %v699
    %970 = vmatprep.subr.mxu0 0.0
    %971 = vmatpush1.msra.mxu0 %v700
    %972 = vmatprep.subr.mxu0 0.0
    %973 = vmatpush1.msra.mxu0 %v701
    %974 = vmatprep.subr.mxu0 0.0
    %975 = vmatpush1.msra.mxu0 %v702
    %976 = vmatprep.subr.mxu0 0.0
    %977 = vmatpush1.msra.mxu0 %v703
    %978 = vmatprep.subr.mxu0 0.0
    %979 = vmatpush1.msra.mxu0 %v704
    %980 = vmatprep.subr.mxu0 0.0
    %981 = vmatpush1.msra.mxu0 %v705
    %982 = vmatprep.subr.mxu0 0.0
    %983 = vmatpush1.msra.mxu0 %v706
    %984 = vmatprep.subr.mxu0 0.0
    %985 = vmatpush1.msra.mxu0 %v707
    %986 = vmatprep.subr.mxu0 0.0
    %987 = vmatpush1.msra.mxu0 %v708
    %988 = vmatprep.subr.mxu0 0.0
    %989 = vmatpush1.msra.mxu0 %v709
    %990 = vmatprep.subr.mxu0 0.0
    %991 = vmatpush1.msra.mxu0 %v710
    %992 = vmatprep.mubr.f32.mxu0 %v582
    %993 = vmatmul.mubr.f32.gmra.mrb[0].mxu0 %v581
    %v994 = vpop.f32.mrb[0].mxu0
    %v995 = vadd.f32 %v925, %v994
    %v996 = vpop.f32.mrb[0].mxu0
    %997 = vdwg.mxu0
    %v998 = vlaneseq
    %v999 = vand.u32 %v998, 127
    %v1000 = vld [vmem:[%s5] sm:$0xff]
    %vm1001 = vcmp.ge.s32.totalorder %v999, 0
    %vm1002 = vcmp.lt.s32.totalorder %v999, 10
    %vm1003 = vmand %vm1001, %vm1002
    %v1004 = vsel %vm1003, %v995, -1e+30
    %1005 = vmax.xlane.f32.xlu0 %v1004
    %v1006 = vpop.xlane.xlu0 %1005
    %v1007 = vsub.f32 %v1004, %v1006
    %v1008 = vmul.f32 %v1007, 1.442695
    %v1009 = vpow.pop %v1008
    %1010 = vadd.xlane.f32.xlu0 %v1009
    %v1011 = vpop.xlane.xlu0 %1010
    %v1012 = vlog2.pop %v1011
    %v1013 = vmul.f32 %v1012, 0.6931472
    %v1014 = vadd.f32 %v1013, %v1006
    %v1015 = vsel %vm1003, %v995, 0.0
    %v1016 = vmul.f32 %v1015, %v1000
    %1017 = vadd.xlane.f32.xlu0 %v1016
    %v1018 = vpop.xlane.xlu0 %1017
    %v1019 = vsub.f32 %v1014, %v1018
    %vm1020 = vcmp.ge.s32.totalorder %v999, 10
    %vm1021 = vcmp.lt.s32.totalorder %v999, 20
    %vm1022 = vmand %vm1020, %vm1021
    %v1023 = vsel %vm1022, %v995, -1e+30
    %1024 = vmax.xlane.f32.xlu0 %v1023
    %v1025 = vpop.xlane.xlu0 %1024
    %v1026 = vsub.f32 %v1023, %v1025
    %v1027 = vmul.f32 %v1026, 1.442695
    %v1028 = vpow.pop %v1027
    %1029 = vadd.xlane.f32.xlu0 %v1028
    %v1030 = vpop.xlane.xlu0 %1029
    %v1031 = vlog2.pop %v1030
    %v1032 = vmul.f32 %v1031, 0.6931472
    %v1033 = vadd.f32 %v1032, %v1025
    %v1034 = vsel %vm1022, %v995, 0.0
    %v1035 = vmul.f32 %v1034, %v1000
    %1036 = vadd.xlane.f32.xlu0 %v1035
    %v1037 = vpop.xlane.xlu0 %1036
    %v1038 = vsub.f32 %v1033, %v1037
    %s1039 = smul.u32 0, 8
    %v1040 = vlaneseq
    %v1041 = vshrl.u32 %v1040, 7
    %v1042 = vstv %s1039
    %v1043 = vadd.s32 %v1042, %v1041
    %vm1044 = vcmp.lt.s32.totalorder %v1043, 2
    %v1045 = vsel %vm1044, 1, 0
    %v1046 = vcvt.s32.f32 %v1045
    %v1047 = vmul.f32 %v1019, %v1046
    %v1048 = vmul.f32 %v1038, %v1046
    %vm1049 = vcmp.eq.s32.totalorder %v999, 0
    %v1050 = vsel %vm1049, %v1048, 0.0
    %vm1051 = vcmp.eq.s32.totalorder %v999, 1
    %v1052 = vsel %vm1051, %v1047, 0.0
    %v1053 = vadd.f32 %v1050, %v1052
    %v1054 = vrot.slane %v1053, 4
    %v1055 = vadd.f32 %v1053, %v1054
    %v1056 = vrot.slane %v1055, 2
    %v1057 = vadd.f32 %v1055, %v1056
    %v1058 = vrot.slane %v1057, 1
    %v1059 = vadd.f32 %v1057, %v1058
    %p1060 = scmp.eq.s32.totalorder 0, 0
    // Predicated region
    $region34: #{differentiable_autoaug_forward.1} parent=1 // pred_check
      %p1061 = pneg %p1060
    $region35: #{differentiable_autoaug_forward.1} parent=1 // pred_check_branch
      %1063 = sbr.rel (%p1061) target = $region37
    $region36: #{differentiable_autoaug_forward.1} parent=1 // pred_region
      %1064 = vst [vmem:[%s7] sm:$0x1] 0.0
    $region37: #{differentiable_autoaug_forward.1} parent=1 // pred_fallthru
      _
    %v1065 = vld [vmem:[%s7] sm:$0x1]
    %v1066 = vadd.f32 %v1065, %v1059
    %1067 = vst [vmem:[%s7] sm:$0x1] %v1066
    // Predicated region
    $region38: #{differentiable_autoaug_forward.1} parent=1 // pred_check
      _
    $region39: #{differentiable_autoaug_forward.1} parent=1 // pred_check_branch
      %1069 = sbr.rel (0) target = $region41
    $region40: #{differentiable_autoaug_forward.1} parent=1 // pred_region
      _
    $region41: #{differentiable_autoaug_forward.1} parent=1 // pred_fallthru
      _
    // Predicated region
    $region42: #{differentiable_autoaug_forward.1} parent=1 // pred_check
      _
    $region43: #{differentiable_autoaug_forward.1} parent=1 // pred_check_branch
      %1071 = sbr.rel (0) target = $region45
    $region44: #{differentiable_autoaug_forward.1} parent=1 // pred_region
      _
    $region45: #{differentiable_autoaug_forward.1} parent=1 // pred_fallthru
      _
    // Predicated region
    $region46: #{differentiable_autoaug_forward.1} parent=1 // pred_check
      _
    $region47: #{differentiable_autoaug_forward.1} parent=1 // pred_check_branch
      %1073 = sbr.rel (0) target = $region49
    $region48: #{differentiable_autoaug_forward.1} parent=1 // pred_region
      _
    $region49: #{differentiable_autoaug_forward.1} parent=1 // pred_fallthru
      _
    // Predicated region
    $region50: #{differentiable_autoaug_forward.1} parent=1 // pred_check
      _
    $region51: #{differentiable_autoaug_forward.1} parent=1 // pred_check_branch
      %1075 = sbr.rel (0) target = $region53
    $region52: #{differentiable_autoaug_forward.1} parent=1 // pred_region
      _
    $region53: #{differentiable_autoaug_forward.1} parent=1 // pred_fallthru
      _
    %1076 = vsyncpa [#allocation3], 1
    %1077 = vsyncpa [#allocation5], 1

</llo_original>
